<compile_context>
chip_gen: v6e
topology: v6e:2x2x1
jax: 0.10.0
libtpu: 0.0.40
codegen_flags: <defaults>
</compile_context>

<pallas_src>
import functools

import jax
import jax.numpy as jnp
from jax.experimental import pallas as pl
from jax.experimental.pallas import tpu as pltpu

EPS = 1e-5            # nn.BatchNorm1d default eps
LANE = 128            # lane width: pad all feature dims to a multiple of this
N_PARTS = 2           # leading "parallel" grid axis (megacore on v7x)


def _round_up(x, m):
    return (x + m - 1) // m * m


def _phys_vmem_bytes():
    """Physical VMEM per core, with a conservative fallback (v7x has 64 MiB)."""
    try:
        info = pltpu.get_tpu_info()
        for attr in ("vmem_capacity_bytes", "vmem_size_bytes", "vmem_bytes"):
            v = getattr(info, attr, None)
            if v:
                return int(v)
    except Exception:
        pass
    return 64 * 1024 * 1024


_PHYS_VMEM = _phys_vmem_bytes()
# Never request the whole physical VMEM (leave headroom for Mosaic scratch).
VMEM_LIMIT = max(32 * 1024 * 1024, min(_PHYS_VMEM - 16 * 1024 * 1024,
                                       112 * 1024 * 1024))
ACT_BUDGET = VMEM_LIMIT // 3          # bytes for double-buffered activations


def _compiler_params(semantics):
    return pltpu.CompilerParams(dimension_semantics=semantics,
                                vmem_limit_bytes=VMEM_LIMIT)


def _pick_row_tile(n_rows, in_w, in_bytes, out_w, out_bytes, w_block_bytes):
    """Per-layer row tile: power-of-two multiple of 256, sized to this layer's
    in/out widths so narrow hidden layers get large M tiles."""
    budget = max(ACT_BUDGET - 2 * w_block_bytes, 2 * 1024 * 1024)
    per_row = 2 * (in_w * in_bytes + out_w * out_bytes)      # double-buffered
    limit = min(budget // max(per_row, 1), 2048, _round_up(max(n_rows, 1), 256))
    tile = 256
    while tile * 2 <= limit:
        tile *= 2
    return tile


def _pick_o_tile(o_pad):
    """Output-column tile for the final layer (divides o_pad, <= 2048)."""
    m = o_pad // LANE
    best = 1
    for t in range(1, min(m, 16) + 1):
        if m % t == 0:
            best = t
    return LANE * best


# ----------------------------------------------------------------------------
# In-kernel helpers
# ----------------------------------------------------------------------------

def _fold_bn(stats, gamma, beta, inv_n):
    """Sum per-core partial (sum, sumsq) stats and fold BN + affine into a
    per-feature (scale, shift) pair.  stats: (N_PARTS, 2, F)."""
    tot = stats[0]
    for p in range(1, stats.shape[0]):
        tot = tot + stats[p]                      # (2, F)
    mean = tot[0:1] * inv_n
    var = jnp.maximum(tot[1:2] * inv_n - mean * mean, 0.0)
    scale = gamma * jax.lax.rsqrt(var + EPS)
    shift = beta - mean * scale
    return scale, shift


def _store_and_stats(h, h_ref, stats_ref, c, i, n_valid, tile, half):
    """Store bf16 activations; accumulate masked per-feature sum / sumsq for
    this core's partial (XLU row reduce, f32 source -- no MXU, no bf16 trip)."""
    h_ref[...] = h.astype(jnp.bfloat16)

    row0 = (c * half + i) * tile
    row = row0 + jax.lax.broadcasted_iota(jnp.int32, (tile, 1), 0)
    hm = jnp.where(row < n_valid, h, 0.0)         # padded rows excluded
    psum = jnp.sum(hm, axis=0, keepdims=True)     # (1, F)
    psq = jnp.sum(hm * hm, axis=0, keepdims=True)
    part = jnp.concatenate([psum, psq], axis=0)   # (2, F)
    part = part.reshape((1,) + part.shape)        # (1, 2, F)

    @pl.when(i == 0)
    def _():
        stats_ref[...] = jnp.zeros_like(stats_ref)

    stats_ref[...] += part


# ----------------------------------------------------------------------------
# Kernels
# ----------------------------------------------------------------------------

def _embed_layer_kernel(idx_ref, tab_ref, b_ref, h_ref, stats_ref, *,
                        n_valid, tile, half, n_emb, v_pad):
    """Fused (embedding gather+sum + Linear1) via one multi-hot bf16 GEMM,
    + ReLU + per-core BN-stat accumulation."""
    c = pl.program_id(0)
    i = pl.program_id(1)

    idx = idx_ref[...]                                        # (tile, n_emb) i32
    lane = jax.lax.broadcasted_iota(jnp.int32, (tile, v_pad), 1)
    mh = jnp.zeros((tile, v_pad), jnp.bfloat16)
    for k in range(n_emb):                                    # multi-hot rows
        mh = mh + (idx[:, k:k + 1] == lane).astype(jnp.bfloat16)

    h = jnp.dot(mh, tab_ref[...], preferred_element_type=jnp.float32) + b_ref[...]
    h = jnp.maximum(h, 0.0)
    _store_and_stats(h, h_ref, stats_ref, c, i, n_valid, tile, half)


def _mid_layer_kernel(h_in_ref, stats_in_ref, g_ref, bt_ref, w_ref, b_ref,
                      h_ref, stats_ref, *, n_valid, tile, half, inv_n):
    """Fused (BN scale/shift of previous layer, folded in-kernel) + Linear
    + ReLU + per-core BN-stat accumulation."""
    c = pl.program_id(0)
    i = pl.program_id(1)
    scale, shift = _fold_bn(stats_in_ref[...], g_ref[...], bt_ref[...], inv_n)
    hn = h_in_ref[...].astype(jnp.float32) * scale + shift
    h = jnp.dot(hn.astype(jnp.bfloat16), w_ref[...],
                preferred_element_type=jnp.float32) + b_ref[...]
    h = jnp.maximum(h, 0.0)
    _store_and_stats(h, h_ref, stats_ref, c, i, n_valid, tile, half)


def _final_layer_kernel(h_in_ref, stats_in_ref, g_ref, bt_ref, w_ref, b_ref,
                        out_ref, *, inv_n):
    """Fused (BN scale/shift of last hidden layer) + final Linear; output is
    2-D tiled over (rows, output columns)."""
    scale, shift = _fold_bn(stats_in_ref[...], g_ref[...], bt_ref[...], inv_n)
    hn = h_in_ref[...].astype(jnp.float32) * scale + shift
    out_ref[...] = jnp.dot(hn.astype(jnp.bfloat16), w_ref[...],
                           preferred_element_type=jnp.float32) + b_ref[...]


# ----------------------------------------------------------------------------
# pallas_call wrappers
# ----------------------------------------------------------------------------

def _embed_layer_call(idx, fold_tab, b1, *, tile, n_valid, n_pad):
    n_emb = idx.shape[1]
    v_pad, h_dim = fold_tab.shape
    half = n_pad // (N_PARTS * tile)
    kernel = functools.partial(_embed_layer_kernel, n_valid=n_valid, tile=tile,
                               half=half, n_emb=n_emb, v_pad=v_pad)
    row_map = lambda c, i, half=half: (c * half + i, 0)
    in_specs = [pl.BlockSpec((tile, n_emb), row_map),
                pl.BlockSpec(fold_tab.shape, lambda c, i: (0, 0)),
                pl.BlockSpec(b1.shape, lambda c, i: (0, 0))]
    out_shape = (jax.ShapeDtypeStruct((n_pad, h_dim), jnp.bfloat16),
                 jax.ShapeDtypeStruct((N_PARTS, 2, h_dim), jnp.float32))
    out_specs = (pl.BlockSpec((tile, h_dim), row_map),
                 pl.BlockSpec((1, 2, h_dim), lambda c, i: (c, 0, 0)))
    return pl.pallas_call(
        kernel, grid=(N_PARTS, half), in_specs=in_specs, out_specs=out_specs,
        out_shape=out_shape,
        compiler_params=_compiler_params(("parallel", "arbitrary")),
    )(idx, fold_tab, b1)


def _mid_layer_call(h, stats_in, gamma, beta, w, b, *, tile, n_valid, n_pad):
    in_dim = h.shape[1]
    h_dim = w.shape[1]
    half = n_pad // (N_PARTS * tile)
    kernel = functools.partial(_mid_layer_kernel, n_valid=n_valid, tile=tile,
                               half=half, inv_n=1.0 / n_valid)
    row_map = lambda c, i, half=half: (c * half + i, 0)
    in_specs = [pl.BlockSpec((tile, in_dim), row_map),
                pl.BlockSpec(stats_in.shape, lambda c, i: (0, 0, 0)),
                pl.BlockSpec(gamma.shape, lambda c, i: (0, 0)),
                pl.BlockSpec(beta.shape, lambda c, i: (0, 0)),
                pl.BlockSpec(w.shape, lambda c, i: (0, 0)),
                pl.BlockSpec(b.shape, lambda c, i: (0, 0))]
    out_shape = (jax.ShapeDtypeStruct((n_pad, h_dim), jnp.bfloat16),
                 jax.ShapeDtypeStruct((N_PARTS, 2, h_dim), jnp.float32))
    out_specs = (pl.BlockSpec((tile, h_dim), row_map),
                 pl.BlockSpec((1, 2, h_dim), lambda c, i: (c, 0, 0)))
    return pl.pallas_call(
        kernel, grid=(N_PARTS, half), in_specs=in_specs, out_specs=out_specs,
        out_shape=out_shape,
        compiler_params=_compiler_params(("parallel", "arbitrary")),
    )(h, stats_in, gamma, beta, w, b)


def _final_layer_call(h, stats_in, gamma, beta, w, b, *, tile, o_tile,
                      n_valid, n_pad):
    in_dim = h.shape[1]
    o_pad = w.shape[1]
    n_row = n_pad // tile
    n_col = o_pad // o_tile
    kernel = functools.partial(_final_layer_kernel, inv_n=1.0 / n_valid)
    in_specs = [pl.BlockSpec((tile, in_dim), lambda i, j: (i, 0)),
                pl.BlockSpec(stats_in.shape, lambda i, j: (0, 0, 0)),
                pl.BlockSpec(gamma.shape, lambda i, j: (0, 0)),
                pl.BlockSpec(beta.shape, lambda i, j: (0, 0)),
                pl.BlockSpec((in_dim, o_tile), lambda i, j: (0, j)),
                pl.BlockSpec((1, o_tile), lambda i, j: (0, j))]
    return pl.pallas_call(
        kernel, grid=(n_row, n_col), in_specs=in_specs,
        out_specs=pl.BlockSpec((tile, o_tile), lambda i, j: (i, j)),
        out_shape=jax.ShapeDtypeStruct((n_pad, o_pad), jnp.float32),
        compiler_params=_compiler_params(("parallel", "parallel")),
    )(h, stats_in, gamma, beta, w, b)


# ----------------------------------------------------------------------------
# Parameters + forward
# ----------------------------------------------------------------------------

def init_params(key, adj_embedding_dim, node_cnt, hidden_dim, adj_num_layers,
                embedding_dict):
    """Synthetic parameters mirroring the PyTorch module, pre-padded to
    128-lane multiples; the first Linear is folded into the embedding tables."""
    if adj_num_layers <= 1:
        raise ValueError('adj_num_layers must be greater than 1')
    if not embedding_dict:
        raise NotImplementedError(
            "latent + InstanceNorm1d path not implemented")  # TODO(synk)

    E, H, O = adj_embedding_dim, hidden_dim, node_cnt ** 2
    E_pad = _round_up(E, LANE)
    H_pad = _round_up(H, LANE)
    O_pad = _round_up(O, LANE)
    keys = iter(jax.random.split(key, len(embedding_dict) + 2 * adj_num_layers + 4))

    raw_tables, tables_padded = {}, {}
    for k, n in embedding_dict.items():
        tab = jax.random.normal(next(keys), (n, E), jnp.float32)   # ~ N(0,1)
        raw_tables[k] = tab
        tables_padded[k] = jnp.zeros((n, E_pad), jnp.float32).at[:, :E].set(tab)

    hidden = []
    in_dim, in_pad = E, E_pad
    for _ in range(adj_num_layers - 1):
        bound = 1.0 / (in_dim ** 0.5)
        W = jax.random.uniform(next(keys), (in_dim, H), jnp.float32, -bound, bound)
        b = jax.random.uniform(next(keys), (H,), jnp.float32, -bound, bound)
        W_p = jnp.zeros((in_pad, H_pad), jnp.float32).at[:in_dim, :H].set(W)
        b_p = jnp.zeros((1, H_pad), jnp.float32).at[0, :H].set(b)
        g_p = jnp.zeros((1, H_pad), jnp.float32).at[0, :H].set(1.0)   # BN weight
        beta_p = jnp.zeros((1, H_pad), jnp.float32)                   # BN bias
        hidden.append((W_p.astype(jnp.bfloat16), b_p, g_p, beta_p))
        in_dim, in_pad = H, H_pad

    bound = 1.0 / (in_dim ** 0.5)
    Wf = jax.random.uniform(next(keys), (in_dim, O), jnp.float32, -bound, bound)
    bfin = jax.random.uniform(next(keys), (O,), jnp.float32, -bound, bound)
    Wf_p = jnp.zeros((in_pad, O_pad), jnp.float32).at[:in_dim, :O].set(Wf)
    bf_p = jnp.zeros((1, O_pad), jnp.float32).at[0, :O].set(bfin)

    # Fold layer-1 Linear into the embedding tables (offline f32 matmul), concat
    # all tables along the vocab axis, cast to bf16 for the MXU.
    W1_f32 = hidden[0][0].astype(jnp.float32)          # (E_pad, H_pad)
    V_total = sum(embedding_dict.values())
    V_pad = _round_up(V_total, LANE)
    fold = jnp.zeros((V_pad, H_pad), jnp.float32)
    offsets, off = {}, 0
    for k, n in embedding_dict.items():
        fold = fold.at[off:off + n, :].set(raw_tables[k] @ W1_f32[:E, :])
        offsets[k] = off
        off += n
    fold = fold.astype(jnp.bfloat16)

    dims = dict(E=E, H=H, O=O, E_pad=E_pad, H_pad=H_pad, O_pad=O_pad,
                V_pad=V_pad, node_cnt=node_cnt)
    return dict(fold_table=fold, offsets=offsets, tables=tables_padded,
                hidden=hidden, final=(Wf_p.astype(jnp.bfloat16), bf_p),
                dims=dims)


def adjacency_model_forward(params, add_dict):
    """add_dict: {key: int32 (B, S)} -> (B, S, node_cnt, node_cnt) float32."""
    d = params["dims"]
    keys = list(add_dict.keys())
    B, S = add_dict[keys[0]].shape
    N = B * S
    n_emb = len(keys)
    H_pad, O_pad, V_pad = d["H_pad"], d["O_pad"], d["V_pad"]

    # Per-layer row tiles (power-of-two multiples of 256).
    tile_l1 = _pick_row_tile(N, n_emb, 4, H_pad, 2, V_pad * H_pad * 2)
    tile_mid = _pick_row_tile(N, H_pad, 2, H_pad, 2, H_pad * H_pad * 2)
    o_tile = _pick_o_tile(O_pad)
    tile_fin = _pick_row_tile(N, H_pad, 2, o_tile, 4, H_pad * o_tile * 2)

    stats_tiles = [tile_l1] + [tile_mid] * (len(params["hidden"]) - 1)
    align = max(N_PARTS * max(stats_tiles), tile_fin)
    n_pad = _round_up(N, align)

    # Pack all index streams into one (n_pad, n_emb) int32 array, pre-offset
    # into the concatenated-vocab coordinate space.
    cols = [add_dict[k].reshape(N).astype(jnp.int32) + params["offsets"][k]
            for k in keys]
    idx = jnp.stack(cols, axis=1)
    idx = jnp.pad(idx, ((0, n_pad - N), (0, 0)))

    # Layer 1: folded embedding GEMM + ReLU + per-core BN stats.
    _, b1, g, bt = params["hidden"][0]
    h, stats = _embed_layer_call(idx, params["fold_table"], b1,
                                 tile=tile_l1, n_valid=N, n_pad=n_pad)

    # Middle hidden layers: normalize(prev, fused) + Linear + ReLU + stats.
    for (W, b, g_next, bt_next) in params["hidden"][1:]:
        h, stats = _mid_layer_call(h, stats, g, bt, W, b,
                                   tile=tile_mid, n_valid=N, n_pad=n_pad)
        g, bt = g_next, bt_next

    # Final layer: normalize(last hidden, fused) + Linear, 2-D tiled output.
    Wf, bfin = params["final"]
    out = _final_layer_call(h, stats, g, bt, Wf, bfin, tile=tile_fin,
                            o_tile=o_tile, n_valid=N, n_pad=n_pad)
    out = out[:N, :d["O"]]
    return out.reshape(B, S, d["node_cnt"], d["node_cnt"])


def _reference_forward(params, add_dict):
    """Pure-JAX f32 reference (same padded params, unfolded path)."""
    d = params["dims"]
    keys = list(add_dict.keys())
    B, S = add_dict[keys[0]].shape
    x = jnp.zeros((B * S, d["E_pad"]), jnp.float32)
    for k in keys:
        x = x + jnp.take(params["tables"][k], add_dict[k].reshape(-1), axis=0)
    h = x
    for (W, b, g, bt) in params["hidden"]:
        h = jnp.maximum(h @ W.astype(jnp.float32) + b, 0.0)
        mean = h.mean(axis=0, keepdims=True)
        var = ((h - mean) ** 2).mean(axis=0, keepdims=True)
        h = (h - mean) * jax.lax.rsqrt(var + EPS) * g + bt
    Wf, bfin = params["final"]
    out = h @ Wf.astype(jnp.float32) + bfin
    return out[:, :d["O"]].reshape(B, S, d["node_cnt"], d["node_cnt"])


if __name__ == "__main__":
    # Small, module-consistent config.
    adj_embedding_dim = 8
    node_cnt = 4
    hidden_dim = 32
    adj_num_layers = 3
    embedding_dict = {"month": 12, "wday": 7, "hour": 24}
    B, S = 2, 8

    root = jax.random.PRNGKey(0)
    pkey, dkey = jax.random.split(root)
    params = init_params(pkey, adj_embedding_dim, node_cnt, hidden_dim,
                         adj_num_layers, embedding_dict)

    dkeys = jax.random.split(dkey, len(embedding_dict))
    add_dict = {
        k: jax.random.randint(dk, (B, S), 0, n, dtype=jnp.int32)
        for dk, (k, n) in zip(dkeys, embedding_dict.items())
    }

    out = adjacency_model_forward(params, add_dict)
    out = jax.block_until_ready(out)
    assert out.shape == (B, S, node_cnt, node_cnt), out.shape
    assert bool(jnp.all(jnp.isfinite(out)))

    # Sanity check against the pure-JAX reference (bf16 MXU => loose tolerance).
    ref = jax.block_until_ready(_reference_forward(params, add_dict))
    max_err = float(jnp.max(jnp.abs(out - ref)))
    assert max_err < 0.1, f"mismatch vs reference: {max_err}"

    print("KERNEL_OK")
</pallas_src>

<mosaic_0001>
module attributes {stable_mosaic.version = 11 : i64} {
  func.func @_embed_layer_kernel(%arg0: i32, %arg1: i32, %arg2: memref<256x3xi32, #tpu.memory_space<vmem>>, %arg3: memref<128x128xbf16, #tpu.memory_space<vmem>>, %arg4: memref<1x128xf32, #tpu.memory_space<vmem>>, %arg5: memref<256x128xbf16, #tpu.memory_space<vmem>>, %arg6: memref<1x2x128xf32, #tpu.memory_space<vmem>>) attributes {dimension_semantics = [#tpu.dimension_semantics<parallel>, #tpu.dimension_semantics<arbitrary>], iteration_bounds = array<i64: 2, 1>, scalar_prefetch = 0 : i64, scratch_operands = 0 : i64, tpu.core_type = #tpu.core_type<tc>, window_params = [{transform_indices = @transform_0, window_bounds = array<i64: 256, 3>}, {pipeline_mode = #tpu.pipeline_mode<synchronous>, transform_indices = @transform_1, window_bounds = array<i64: 128, 128>}, {pipeline_mode = #tpu.pipeline_mode<synchronous>, transform_indices = @transform_2, window_bounds = array<i64: 1, 128>}, {transform_indices = @transform_3, window_bounds = array<i64: 256, 128>}, {transform_indices = @transform_4, window_bounds = array<i64: 1, 2, 128>}]} {
    %c0 = arith.constant 0 : index
    %c0_0 = arith.constant 0 : index
    %0 = vector.load %arg2[%c0, %c0_0] : memref<256x3xi32, #tpu.memory_space<vmem>>, vector<256x3xi32>
    %1 = tpu.iota {dimensions = array<i32: 1>} : vector<256x128xi32>
    %cst = arith.constant 0.000000e+00 : bf16
    %2 = vector.broadcast %cst : bf16 to vector<256x128xbf16>
    %3 = vector.extract_strided_slice %0 {offsets = [0, 0], sizes = [256, 1], strides = [1, 1]} : vector<256x3xi32> to vector<256x1xi32>
    %4 = vector.broadcast %3 : vector<256x1xi32> to vector<256x128xi32>
    %5 = arith.cmpi eq, %4, %1 : vector<256x128xi32>
    %6 = arith.extui %5 : vector<256x128xi1> to vector<256x128xi32>
    %7 = arith.sitofp %6 : vector<256x128xi32> to vector<256x128xf32>
    %8 = arith.truncf %7 : vector<256x128xf32> to vector<256x128xbf16>
    %9 = arith.addf %2, %8 : vector<256x128xbf16>
    %10 = vector.extract_strided_slice %0 {offsets = [0, 1], sizes = [256, 1], strides = [1, 1]} : vector<256x3xi32> to vector<256x1xi32>
    %11 = vector.broadcast %10 : vector<256x1xi32> to vector<256x128xi32>
    %12 = arith.cmpi eq, %11, %1 : vector<256x128xi32>
    %13 = arith.extui %12 : vector<256x128xi1> to vector<256x128xi32>
    %14 = arith.sitofp %13 : vector<256x128xi32> to vector<256x128xf32>
    %15 = arith.truncf %14 : vector<256x128xf32> to vector<256x128xbf16>
    %16 = arith.addf %9, %15 : vector<256x128xbf16>
    %17 = vector.extract_strided_slice %0 {offsets = [0, 2], sizes = [256, 1], strides = [1, 1]} : vector<256x3xi32> to vector<256x1xi32>
    %18 = vector.broadcast %17 : vector<256x1xi32> to vector<256x128xi32>
    %19 = arith.cmpi eq, %18, %1 : vector<256x128xi32>
    %20 = arith.extui %19 : vector<256x128xi1> to vector<256x128xi32>
    %21 = arith.sitofp %20 : vector<256x128xi32> to vector<256x128xf32>
    %22 = arith.truncf %21 : vector<256x128xf32> to vector<256x128xbf16>
    %23 = arith.addf %16, %22 : vector<256x128xbf16>
    %c0_1 = arith.constant 0 : index
    %c0_2 = arith.constant 0 : index
    %24 = vector.load %arg3[%c0_1, %c0_2] : memref<128x128xbf16, #tpu.memory_space<vmem>>, vector<128x128xbf16>
    %cst_3 = arith.constant dense<0.000000e+00> : vector<256x128xf32>
    %25 = tpu.matmul %23, %24, %cst_3 {dimension_numbers = #tpu.dot_dimension_numbers<[1], [0], [0], [1], [0, 0, 1, 1], [], []>} : vector<256x128xbf16>, vector<128x128xbf16>, vector<256x128xf32> -> vector<256x128xf32>
    %c0_4 = arith.constant 0 : index
    %c0_5 = arith.constant 0 : index
    %26 = vector.load %arg4[%c0_4, %c0_5] : memref<1x128xf32, #tpu.memory_space<vmem>>, vector<1x128xf32>
    %27 = vector.broadcast %26 : vector<1x128xf32> to vector<256x128xf32>
    %28 = arith.addf %25, %27 : vector<256x128xf32>
    %cst_6 = arith.constant 0.000000e+00 : f32
    %29 = vector.broadcast %cst_6 : f32 to vector<256x128xf32>
    %30 = arith.maximumf %28, %29 : vector<256x128xf32>
    %31 = arith.truncf %30 : vector<256x128xf32> to vector<256x128xbf16>
    %c0_7 = arith.constant 0 : index
    %c0_8 = arith.constant 0 : index
    %32 = vector.load %arg5[%c0_7, %c0_8] : memref<256x128xbf16, #tpu.memory_space<vmem>>, vector<256x128xbf16>
    tpu.vector_store %arg5[%c0_7, %c0_8], %31 {strides = array<i32>} : memref<256x128xbf16, #tpu.memory_space<vmem>>, vector<256x128xbf16>,
    %c1_i32 = arith.constant 1 : i32
    %33 = arith.muli %arg0, %c1_i32 : i32
    %34 = arith.addi %33, %arg1 : i32
    %c256_i32 = arith.constant 256 : i32
    %35 = arith.muli %34, %c256_i32 : i32
    %36 = tpu.iota {dimensions = array<i32: 0>} : vector<256x1xi32>
    %37 = vector.broadcast %35 : i32 to vector<256x1xi32>
    %38 = arith.addi %37, %36 : vector<256x1xi32>
    %c16_i32 = arith.constant 16 : i32
    %39 = vector.broadcast %c16_i32 : i32 to vector<256x1xi32>
    %40 = arith.cmpi slt, %38, %39 : vector<256x1xi32>
    %cst_9 = arith.constant 0.000000e+00 : f32
    %41 = vector.shape_cast %40 : vector<256x1xi1> to vector<256x1xi1>
    %42 = vector.broadcast %41 : vector<256x1xi1> to vector<256x128xi1>
    %43 = vector.broadcast %cst_9 : f32 to vector<256x128xf32>
    %44 = arith.select %42, %30, %43 : vector<256x128xi1>, vector<256x128xf32>
    %cst_10 = arith.constant dense<0.000000e+00> : vector<128xf32>
    %45 = vector.multi_reduction <add>, %44, %cst_10 [0] : vector<256x128xf32> to vector<128xf32>
    %46 = vector.shape_cast %45 : vector<128xf32> to vector<1x128xf32>
    %47 = arith.mulf %44, %44 : vector<256x128xf32>
    %cst_11 = arith.constant dense<0.000000e+00> : vector<128xf32>
    %48 = vector.multi_reduction <add>, %47, %cst_11 [0] : vector<256x128xf32> to vector<128xf32>
    %49 = vector.shape_cast %48 : vector<128xf32> to vector<1x128xf32>
    %50 = tpu.concatenate %46, %49 in 0 : vector<1x128xf32>, vector<1x128xf32> -> vector<2x128xf32>
    %51 = vector.shape_cast %50 : vector<2x128xf32> to vector<1x2x128xf32>
    %c0_i32 = arith.constant 0 : i32
    %52 = arith.cmpi eq, %arg1, %c0_i32 : i32
    %53 = arith.extui %52 : i1 to i32
    %c0_i32_12 = arith.constant 0 : i32
    %54 = arith.cmpi ne, %53, %c0_i32_12 : i32
    scf.if %54 {
      %cst_19 = arith.constant 0.000000e+00 : f32
      %58 = vector.broadcast %cst_19 : f32 to vector<1x2x128xf32>
      %c0_20 = arith.constant 0 : index
      %c0_21 = arith.constant 0 : index
      %c0_22 = arith.constant 0 : index
      %59 = vector.load %arg6[%c0_20, %c0_21, %c0_22] : memref<1x2x128xf32, #tpu.memory_space<vmem>>, vector<1x2x128xf32>
      tpu.vector_store %arg6[%c0_20, %c0_21, %c0_22], %58 {strides = array<i32>} : memref<1x2x128xf32, #tpu.memory_space<vmem>>, vector<1x2x128xf32>,
    } else {
    }
    %c0_13 = arith.constant 0 : index
    %c0_14 = arith.constant 0 : index
    %c0_15 = arith.constant 0 : index
    %55 = vector.load %arg6[%c0_13, %c0_14, %c0_15] : memref<1x2x128xf32, #tpu.memory_space<vmem>>, vector<1x2x128xf32>
    %56 = arith.addf %55, %51 : vector<1x2x128xf32>
    %c0_16 = arith.constant 0 : index
    %c0_17 = arith.constant 0 : index
    %c0_18 = arith.constant 0 : index
    %57 = vector.load %arg6[%c0_16, %c0_17, %c0_18] : memref<1x2x128xf32, #tpu.memory_space<vmem>>, vector<1x2x128xf32>
    tpu.vector_store %arg6[%c0_16, %c0_17, %c0_18], %56 {strides = array<i32>} : memref<1x2x128xf32, #tpu.memory_space<vmem>>, vector<1x2x128xf32>,
    return
  }
  func.func @transform_0(%arg0: i32, %arg1: i32) -> (i32, i32) {
    %c1_i32 = arith.constant 1 : i32
    %0 = arith.muli %arg0, %c1_i32 : i32
    %1 = arith.addi %0, %arg1 : i32
    %c0_i32 = arith.constant 0 : i32
    %c0_i32_0 = arith.constant 0 : i32
    return %1, %c0_i32 : i32, i32
  }
  func.func @transform_1(%arg0: i32, %arg1: i32) -> (i32, i32) {
    %c0_i32 = arith.constant 0 : i32
    %c0_i32_0 = arith.constant 0 : i32
    %c0_i32_1 = arith.constant 0 : i32
    return %c0_i32, %c0_i32_0 : i32, i32
  }
  func.func @transform_2(%arg0: i32, %arg1: i32) -> (i32, i32) {
    %c0_i32 = arith.constant 0 : i32
    %c0_i32_0 = arith.constant 0 : i32
    %c0_i32_1 = arith.constant 0 : i32
    return %c0_i32, %c0_i32_0 : i32, i32
  }
  func.func @transform_3(%arg0: i32, %arg1: i32) -> (i32, i32) {
    %c1_i32 = arith.constant 1 : i32
    %0 = arith.muli %arg0, %c1_i32 : i32
    %1 = arith.addi %0, %arg1 : i32
    %c0_i32 = arith.constant 0 : i32
    %c0_i32_0 = arith.constant 0 : i32
    return %1, %c0_i32 : i32, i32
  }
  func.func @transform_4(%arg0: i32, %arg1: i32) -> (i32, i32, i32) {
    %c0_i32 = arith.constant 0 : i32
    %c0_i32_0 = arith.constant 0 : i32
    %c0_i32_1 = arith.constant 0 : i32
    return %arg0, %c0_i32, %c0_i32_0 : i32, i32, i32
  }
}

</mosaic_0001>

<llo_original>
// kernel: tpu_custom_call.1
$region0: #{tpu_custom_call.1}
  #allocation0 [shape = 'u32[]', space=smem, size = 0x4, offset = 0x4, fixed_abs, tag = 'smem constant byte address 0x4 - core index']
  #allocation1 [shape = 'u32[144,128]{1,0:T(1,128)}', space=vmem, size = 0x12000, scoped, tag = 'internal scratch']
  %s0 = inlined_call_operand.vmem [shape: s32[512,3], index: 0, kind: input, shape index: {}]
  %s1 = inlined_call_operand.vmem [shape: bf16[128,128], index: 1, kind: input, shape index: {}]
  %s2 = inlined_call_operand.vmem [shape: f32[1,128], index: 2, kind: input, shape index: {}]
  %s3 = inlined_call_operand.hbm [shape: bf16[512,128], index: 3, kind: output, shape index: {0}]
  %s4 = inlined_call_operand.hbm [shape: f32[2,2,128], index: 4, kind: output, shape index: {1}]
  %5 = xla_tuple %s3, %s4
  %s6 = sld [smem:[#allocation0]]
  $region57: #{tpu_custom_call.1} parent=0
    _
  %s8 = ssub.s32 1, %s6
  %s9 = scalar_select 0, %s8, %s6
  $region1: #{tpu_custom_call.1} parent=0
    #allocation2 [shape = 'u8[131072]{0}', space=vmem, size = 0x20000, scoped, tag = 'output window, operand 0']
    #allocation3 [shape = 's32[2]{0}', space=sflag, size = 0x8, scoped, tag = 'scoped memory for tpu_custom_call.1']
    #allocation4 [shape = 'u8[2048]{0}', space=vmem, size = 0x800, scoped, tag = 'output window, operand 1']
    #allocation5 [shape = 's32[2]{0}', space=sflag, size = 0x8, scoped, tag = 'scoped memory for tpu_custom_call.1']
    %10 = vsyncpa [#allocation3], 0
    %s11 = scalar_lea.sflag [#allocation3], 1
    %12 = vsyncpa %s11, 0
    %13 = vsyncpa [#allocation5], 0
    %s14 = scalar_lea.sflag [#allocation5], 1
    %15 = vsyncpa %s14, 0
    loop: start=0, step=1, limit=4
    $region2: #{tpu_custom_call.1} parent=1 // loop_pre_header
      _
    $region3: #{tpu_custom_call.1} parent=1 // loop_header
      %s17 = sphi 0, %s21
      %p18 = scmp.ge.s32.totalorder %s17, 4
      %s24 = sphi 0, %s36
      %s25 = sphi 0, %s32
      %s26 = sphi 0, %s24
      %s27 = sphi 0, %s25
      %s28 = sphi 0, %s26
      %s29 = sphi 0, %s27
      %s41 = sphi 0, %s43
      %s44 = sphi 0, %s41
      %s45 = sphi 0, %s44
      %s61 = sphi 0, %s45
      %s65 = sphi 0, %s65
      %s67 = sphi 0, %s65
      %s68 = sphi 0, %s67
      %s82 = sphi 0, %s68
      %s86 = sphi 0, %s86
      %s88 = sphi 0, %s86
      %s89 = sphi 0, %s88
      %s103 = sphi 0, %s89
      %s111 = sphi 0, %s113
      %s114 = sphi 0, %s111
      %s115 = sphi 0, %s114
      %s131 = sphi 0, %s115
      %s137 = sphi 0, %s139
      %s140 = sphi 0, %s137
      %s141 = sphi 0, %s140
      %s157 = sphi 0, %s141
    $region4: #{tpu_custom_call.1} parent=1 // loop_header_branch
      %20 = sbr.rel (%p18) target = $region8
    $region5: #{tpu_custom_call.1} parent=1 // loop_body
      %s22 = ssub.s32 %s17, 1
      %s23 = ssub.s32 %s17, 2
      %s30 = sadd.s32 1, %s25
      %p31 = scmp.ge.s32.totalorder %s30, 1
      %s32 = scalar_select %p31, 0, %s30
      %s33 = sadd.s32 1, %s24
      %s34 = scalar_select %p31, %s33, %s24
      %p35 = scmp.ge.s32.totalorder %s34, 2
      %s36 = scalar_select %p35, 0, %s34
      %s37 = sadd.s32 %s24, %s25
      %s38 = sadd.s32 %s36, %s32
      %s39 = ssub.s32 %s37, %s38
      %p40 = scmp.eq.s32.totalorder %s39, 0
      %s42 = sadd.s32 %s41, 1
      %s43 = scalar_select %p40, %s41, %s42
      %p46 = pneg %p40
      %p47 = scmp.eq.s32.totalorder %s17, 1
      %p48 = por %p46, %p47
      %p49 = scmp.ne.s32.totalorder %s41, %s44
      %p50 = scmp.eq.s32.totalorder %s17, 0
      %p51 = por %p49, %p50
      %p52 = scmp.ne.s32.totalorder %s41, %s44
      %p53 = scmp.eq.s32.totalorder %s22, 1
      %p54 = por %p52, %p53
      %p55 = scmp.ne.s32.totalorder %s44, %s45
      %p56 = scmp.eq.s32.totalorder %s22, 0
      %p57 = por %p55, %p56
      %p58 = scmp.ne.s32.totalorder %s44, %s45
      %p59 = scmp.eq.s32.totalorder %s23, 1
      %p60 = por %p58, %p59
      %p62 = scmp.ne.s32.totalorder %s45, %s61
      %p63 = scmp.eq.s32.totalorder %s23, 0
      %p64 = por %p62, %p63
      %s66 = sadd.s32 %s65, 1
      %p69 = scmp.eq.s32.totalorder %s17, 1
      %p70 = scmp.ne.s32.totalorder %s65, %s67
      %p71 = scmp.eq.s32.totalorder %s17, 0
      %p72 = por %p70, %p71
      %p73 = scmp.ne.s32.totalorder %s65, %s67
      %p74 = scmp.eq.s32.totalorder %s22, 1
      %p75 = por %p73, %p74
      %p76 = scmp.ne.s32.totalorder %s67, %s68
      %p77 = scmp.eq.s32.totalorder %s22, 0
      %p78 = por %p76, %p77
      %p79 = scmp.ne.s32.totalorder %s67, %s68
      %p80 = scmp.eq.s32.totalorder %s23, 1
      %p81 = por %p79, %p80
      %p83 = scmp.ne.s32.totalorder %s68, %s82
      %p84 = scmp.eq.s32.totalorder %s23, 0
      %p85 = por %p83, %p84
      %s87 = sadd.s32 %s86, 1
      %p90 = scmp.eq.s32.totalorder %s17, 1
      %p91 = scmp.ne.s32.totalorder %s86, %s88
      %p92 = scmp.eq.s32.totalorder %s17, 0
      %p93 = por %p91, %p92
      %p94 = scmp.ne.s32.totalorder %s86, %s88
      %p95 = scmp.eq.s32.totalorder %s22, 1
      %p96 = por %p94, %p95
      %p97 = scmp.ne.s32.totalorder %s88, %s89
      %p98 = scmp.eq.s32.totalorder %s22, 0
      %p99 = por %p97, %p98
      %p100 = scmp.ne.s32.totalorder %s88, %s89
      %p101 = scmp.eq.s32.totalorder %s23, 1
      %p102 = por %p100, %p101
      %p104 = scmp.ne.s32.totalorder %s89, %s103
      %p105 = scmp.eq.s32.totalorder %s23, 0
      %p106 = por %p104, %p105
      %s107 = sadd.s32 %s24, %s25
      %s108 = sadd.s32 %s36, %s32
      %s109 = ssub.s32 %s107, %s108
      %p110 = scmp.eq.s32.totalorder %s109, 0
      %s112 = sadd.s32 %s111, 1
      %s113 = scalar_select %p110, %s111, %s112
      %p116 = pneg %p110
      %p117 = scmp.eq.s32.totalorder %s17, 1
      %p118 = por %p116, %p117
      %p119 = scmp.ne.s32.totalorder %s111, %s114
      %p120 = scmp.eq.s32.totalorder %s17, 0
      %p121 = por %p119, %p120
      %p122 = scmp.ne.s32.totalorder %s111, %s114
      %p123 = scmp.eq.s32.totalorder %s22, 1
      %p124 = por %p122, %p123
      %p125 = scmp.ne.s32.totalorder %s114, %s115
      %p126 = scmp.eq.s32.totalorder %s22, 0
      %p127 = por %p125, %p126
      %p128 = scmp.ne.s32.totalorder %s114, %s115
      %p129 = scmp.eq.s32.totalorder %s23, 1
      %p130 = por %p128, %p129
      %p132 = scmp.ne.s32.totalorder %s115, %s131
      %p133 = scmp.eq.s32.totalorder %s23, 0
      %p134 = por %p132, %p133
      %s135 = ssub.s32 %s24, %s36
      %p136 = scmp.eq.s32.totalorder %s135, 0
      %s138 = sadd.s32 %s137, 1
      %s139 = scalar_select %p136, %s137, %s138
      %p142 = pneg %p136
      %p143 = scmp.eq.s32.totalorder %s17, 1
      %p144 = por %p142, %p143
      %p145 = scmp.ne.s32.totalorder %s137, %s140
      %p146 = scmp.eq.s32.totalorder %s17, 0
      %p147 = por %p145, %p146
      %p148 = scmp.ne.s32.totalorder %s137, %s140
      %p149 = scmp.eq.s32.totalorder %s22, 1
      %p150 = por %p148, %p149
      %p151 = scmp.ne.s32.totalorder %s140, %s141
      %p152 = scmp.eq.s32.totalorder %s22, 0
      %p153 = por %p151, %p152
      %p154 = scmp.ne.s32.totalorder %s140, %s141
      %p155 = scmp.eq.s32.totalorder %s23, 1
      %p156 = por %p154, %p155
      %p158 = scmp.ne.s32.totalorder %s141, %s157
      %p159 = scmp.eq.s32.totalorder %s23, 0
      %p160 = por %p158, %p159
      %p161 = scmp.le.s32.totalorder 1, %s17
      %p162 = scmp.lt.s32.totalorder %s17, 3
      %p163 = pnand %p161, %p162
      %p164 = pneg %p163
      // Predicated region
      $region9: #{tpu_custom_call.1} parent=5 // pred_check
        _
      $region10: #{tpu_custom_call.1} parent=5 // pred_check_branch
        %166 = sbr.rel (%p163) target = $region12
      $region11: #{tpu_custom_call.1} parent=5 // pred_region
        %s167 = ssub.s32 %s17, 1
        // Predicated region
        $region13: #{tpu_custom_call.1} parent=11 // pred_check
          %p168 = pneg %p78
        $region14: #{tpu_custom_call.1} parent=11 // pred_check_branch
          %170 = sbr.rel (%p168) target = $region16
        $region15: #{tpu_custom_call.1} parent=11 // pred_region
          _
        $region16: #{tpu_custom_call.1} parent=11 // pred_fallthru
          _
        // Predicated region
        $region17: #{tpu_custom_call.1} parent=11 // pred_check
          %p171 = pneg %p99
        $region18: #{tpu_custom_call.1} parent=11 // pred_check_branch
          %173 = sbr.rel (%p171) target = $region20
        $region19: #{tpu_custom_call.1} parent=11 // pred_region
          _
        $region20: #{tpu_custom_call.1} parent=11 // pred_fallthru
          _
      $region12: #{tpu_custom_call.1} parent=5 // pred_fallthru
        _
      %p174 = scmp.lt.s32.totalorder %s17, 2
      // Predicated region
      $region21: #{tpu_custom_call.1} parent=5 // pred_check
        %p175 = pneg %p174
      $region22: #{tpu_custom_call.1} parent=5 // pred_check_branch
        %177 = sbr.rel (%p175) target = $region24
      $region23: #{tpu_custom_call.1} parent=5 // pred_region
        // Predicated region
        $region25: #{tpu_custom_call.1} parent=23 // pred_check
          %p178 = pneg %p51
        $region26: #{tpu_custom_call.1} parent=23 // pred_check_branch
          %180 = sbr.rel (%p178) target = $region28
        $region27: #{tpu_custom_call.1} parent=23 // pred_region
          %s181 = sadd.s32 %s24, %s25
          %s182 = smul.u32 32, %s181
          %p183 = scmp.lt.s32.totalorder %s182, 63
          %s184 = scalar_select %p183, %s182, 63
          %s185 = smul.addr %s184, 8
          %s186 = scalar_lea.vmem %s0, %s185
          %s187 = sadd.s32 %s24, %s25
          %s188 = smul.u32 32, %s187
        $region28: #{tpu_custom_call.1} parent=23 // pred_fallthru
          _
      $region24: #{tpu_custom_call.1} parent=5 // pred_fallthru
        _
      %p189 = scmp.le.s32.totalorder 1, %s17
      %p190 = scmp.lt.s32.totalorder %s17, 3
      %p191 = pnand %p189, %p190
      %p192 = pneg %p191
      // Predicated region
      $region29: #{tpu_custom_call.1} parent=5 // pred_check
        _
      $region30: #{tpu_custom_call.1} parent=5 // pred_check_branch
        %194 = sbr.rel (%p191) target = $region32
      $region31: #{tpu_custom_call.1} parent=5 // pred_region
        %s195 = ssub.s32 %s17, 1
        %s196 = sadd.s32 %s26, %s27
        %s197 = smul.u32 32, %s196
        %p198 = scmp.lt.s32.totalorder %s197, 63
        %s199 = scalar_select %p198, %s197, 63
        %s200 = smul.addr %s199, 8
        %s201 = scalar_lea.vmem %s0, %s200
        %p202 = pneg %p57
        %p203 = pneg %p54
        %p204 = pneg %p78
        %p205 = pneg %p75
        %p206 = pneg %p99
        %p207 = pneg %p96
        %p208 = pneg %p127
        %p209 = pneg %p124
        %s210 = sand.u32 %s114, 1
        %s211 = scalar_lea.sflag [#allocation3], %s210
        %s212 = sand.u32 %s114, 1
        %s213 = smul.addr %s212, 128
        %s214 = scalar_lea.vmem [#allocation2], %s213
        %p215 = pneg %p153
        %p216 = pneg %p150
        %s217 = sand.u32 %s140, 1
        %s218 = scalar_lea.sflag [#allocation5], %s217
        %s219 = sand.u32 %s140, 1
        %s220 = smul.addr %s219, 2
        %s221 = scalar_lea.vmem [#allocation4], %s220
        %s222 = sadd.s32 %s26, %s27
        %s223 = smul.u32 32, %s222
        %p224 = scmp.lt.s32.totalorder %s223, 63
        %s225 = scalar_select %p224, %s223, 63
        %s226 = smul.addr %s225, 8
        %s227 = scalar_lea.vmem %s0, %s226
        %s228 = sadd.s32 %s26, %s27
        %s229 = smul.u32 32, %s228
        %s230 = sadd.s32 %s26, %s27
        %s231 = smul.u32 32, %s230
        %v233 = vld [vmem:[%s227] sm:$0xff]
        %v234 = vld [vmem:[%s227 + $0x8] sm:$0xff]
        %v235 = vld [vmem:[%s227 + $0x10] sm:$0xff]
        %v236 = vld [vmem:[%s227 + $0x18] sm:$0xff]
        %v237 = vld [vmem:[%s227 + $0x20] sm:$0xff]
        %v238 = vld [vmem:[%s227 + $0x28] sm:$0xff]
        %v239 = vld [vmem:[%s227 + $0x30] sm:$0xff]
        %v240 = vld [vmem:[%s227 + $0x38] sm:$0xff]
        %v241 = vld [vmem:[%s227 + $0x40] sm:$0xff]
        %v242 = vld [vmem:[%s227 + $0x48] sm:$0xff]
        %v243 = vld [vmem:[%s227 + $0x50] sm:$0xff]
        %v244 = vld [vmem:[%s227 + $0x58] sm:$0xff]
        %v245 = vld [vmem:[%s227 + $0x60] sm:$0xff]
        %v246 = vld [vmem:[%s227 + $0x68] sm:$0xff]
        %v247 = vld [vmem:[%s227 + $0x70] sm:$0xff]
        %v248 = vld [vmem:[%s227 + $0x78] sm:$0xff]
        %v249 = vld [vmem:[%s227 + $0x80] sm:$0xff]
        %v250 = vld [vmem:[%s227 + $0x88] sm:$0xff]
        %v251 = vld [vmem:[%s227 + $0x90] sm:$0xff]
        %v252 = vld [vmem:[%s227 + $0x98] sm:$0xff]
        %v253 = vld [vmem:[%s227 + $0xa0] sm:$0xff]
        %v254 = vld [vmem:[%s227 + $0xa8] sm:$0xff]
        %v255 = vld [vmem:[%s227 + $0xb0] sm:$0xff]
        %v256 = vld [vmem:[%s227 + $0xb8] sm:$0xff]
        %v257 = vld [vmem:[%s227 + $0xc0] sm:$0xff]
        %v258 = vld [vmem:[%s227 + $0xc8] sm:$0xff]
        %v259 = vld [vmem:[%s227 + $0xd0] sm:$0xff]
        %v260 = vld [vmem:[%s227 + $0xd8] sm:$0xff]
        %v261 = vld [vmem:[%s227 + $0xe0] sm:$0xff]
        %v262 = vld [vmem:[%s227 + $0xe8] sm:$0xff]
        %v263 = vld [vmem:[%s227 + $0xf0] sm:$0xff]
        %v264 = vld [vmem:[%s227 + $0xf8] sm:$0xff]
        %v265 = vlaneseq
        %v266 = vand.u32 %v265, 127
        %267 = vset.pattern.permute.xlu0 0
        %268 = vperm.xlu0 %267, %v233
        %v269 = vpop.permute.xlu0 %268
        %270 = vset.pattern.permute.xlu0 0
        %271 = vperm.xlu0 %270, %v234
        %v272 = vpop.permute.xlu0 %271
        %273 = vset.pattern.permute.xlu0 0
        %274 = vperm.xlu0 %273, %v235
        %v275 = vpop.permute.xlu0 %274
        %276 = vset.pattern.permute.xlu0 0
        %277 = vperm.xlu0 %276, %v236
        %v278 = vpop.permute.xlu0 %277
        %279 = vset.pattern.permute.xlu0 0
        %280 = vperm.xlu0 %279, %v237
        %v281 = vpop.permute.xlu0 %280
        %282 = vset.pattern.permute.xlu0 0
        %283 = vperm.xlu0 %282, %v238
        %v284 = vpop.permute.xlu0 %283
        %285 = vset.pattern.permute.xlu0 0
        %286 = vperm.xlu0 %285, %v239
        %v287 = vpop.permute.xlu0 %286
        %288 = vset.pattern.permute.xlu0 0
        %289 = vperm.xlu0 %288, %v240
        %v290 = vpop.permute.xlu0 %289
        %291 = vset.pattern.permute.xlu0 0
        %292 = vperm.xlu0 %291, %v241
        %v293 = vpop.permute.xlu0 %292
        %294 = vset.pattern.permute.xlu0 0
        %295 = vperm.xlu0 %294, %v242
        %v296 = vpop.permute.xlu0 %295
        %297 = vset.pattern.permute.xlu0 0
        %298 = vperm.xlu0 %297, %v243
        %v299 = vpop.permute.xlu0 %298
        %300 = vset.pattern.permute.xlu0 0
        %301 = vperm.xlu0 %300, %v244
        %v302 = vpop.permute.xlu0 %301
        %303 = vset.pattern.permute.xlu0 0
        %304 = vperm.xlu0 %303, %v245
        %v305 = vpop.permute.xlu0 %304
        %306 = vset.pattern.permute.xlu0 0
        %307 = vperm.xlu0 %306, %v246
        %v308 = vpop.permute.xlu0 %307
        %309 = vset.pattern.permute.xlu0 0
        %310 = vperm.xlu0 %309, %v247
        %v311 = vpop.permute.xlu0 %310
        %312 = vset.pattern.permute.xlu0 0
        %313 = vperm.xlu0 %312, %v248
        %v314 = vpop.permute.xlu0 %313
        %315 = vset.pattern.permute.xlu0 0
        %316 = vperm.xlu0 %315, %v249
        %v317 = vpop.permute.xlu0 %316
        %318 = vset.pattern.permute.xlu0 0
        %319 = vperm.xlu0 %318, %v250
        %v320 = vpop.permute.xlu0 %319
        %321 = vset.pattern.permute.xlu0 0
        %322 = vperm.xlu0 %321, %v251
        %v323 = vpop.permute.xlu0 %322
        %324 = vset.pattern.permute.xlu0 0
        %325 = vperm.xlu0 %324, %v252
        %v326 = vpop.permute.xlu0 %325
        %327 = vset.pattern.permute.xlu0 0
        %328 = vperm.xlu0 %327, %v253
        %v329 = vpop.permute.xlu0 %328
        %330 = vset.pattern.permute.xlu0 0
        %331 = vperm.xlu0 %330, %v254
        %v332 = vpop.permute.xlu0 %331
        %333 = vset.pattern.permute.xlu0 0
        %334 = vperm.xlu0 %333, %v255
        %v335 = vpop.permute.xlu0 %334
        %336 = vset.pattern.permute.xlu0 0
        %337 = vperm.xlu0 %336, %v256
        %v338 = vpop.permute.xlu0 %337
        %339 = vset.pattern.permute.xlu0 0
        %340 = vperm.xlu0 %339, %v257
        %v341 = vpop.permute.xlu0 %340
        %342 = vset.pattern.permute.xlu0 0
        %343 = vperm.xlu0 %342, %v258
        %v344 = vpop.permute.xlu0 %343
        %345 = vset.pattern.permute.xlu0 0
        %346 = vperm.xlu0 %345, %v259
        %v347 = vpop.permute.xlu0 %346
        %348 = vset.pattern.permute.xlu0 0
        %349 = vperm.xlu0 %348, %v260
        %v350 = vpop.permute.xlu0 %349
        %351 = vset.pattern.permute.xlu0 0
        %352 = vperm.xlu0 %351, %v261
        %v353 = vpop.permute.xlu0 %352
        %354 = vset.pattern.permute.xlu0 0
        %355 = vperm.xlu0 %354, %v262
        %v356 = vpop.permute.xlu0 %355
        %357 = vset.pattern.permute.xlu0 0
        %358 = vperm.xlu0 %357, %v263
        %v359 = vpop.permute.xlu0 %358
        %360 = vset.pattern.permute.xlu0 0
        %361 = vperm.xlu0 %360, %v264
        %v362 = vpop.permute.xlu0 %361
        %vm363 = vcmp.eq.s32.totalorder %v269, %v266
        %vm364 = vcmp.eq.s32.totalorder %v272, %v266
        %vm365 = vcmp.eq.s32.totalorder %v275, %v266
        %vm366 = vcmp.eq.s32.totalorder %v278, %v266
        %vm367 = vcmp.eq.s32.totalorder %v281, %v266
        %vm368 = vcmp.eq.s32.totalorder %v284, %v266
        %vm369 = vcmp.eq.s32.totalorder %v287, %v266
        %vm370 = vcmp.eq.s32.totalorder %v290, %v266
        %vm371 = vcmp.eq.s32.totalorder %v293, %v266
        %vm372 = vcmp.eq.s32.totalorder %v296, %v266
        %vm373 = vcmp.eq.s32.totalorder %v299, %v266
        %vm374 = vcmp.eq.s32.totalorder %v302, %v266
        %vm375 = vcmp.eq.s32.totalorder %v305, %v266
        %vm376 = vcmp.eq.s32.totalorder %v308, %v266
        %vm377 = vcmp.eq.s32.totalorder %v311, %v266
        %vm378 = vcmp.eq.s32.totalorder %v314, %v266
        %vm379 = vcmp.eq.s32.totalorder %v317, %v266
        %vm380 = vcmp.eq.s32.totalorder %v320, %v266
        %vm381 = vcmp.eq.s32.totalorder %v323, %v266
        %vm382 = vcmp.eq.s32.totalorder %v326, %v266
        %vm383 = vcmp.eq.s32.totalorder %v329, %v266
        %vm384 = vcmp.eq.s32.totalorder %v332, %v266
        %vm385 = vcmp.eq.s32.totalorder %v335, %v266
        %vm386 = vcmp.eq.s32.totalorder %v338, %v266
        %vm387 = vcmp.eq.s32.totalorder %v341, %v266
        %vm388 = vcmp.eq.s32.totalorder %v344, %v266
        %vm389 = vcmp.eq.s32.totalorder %v347, %v266
        %vm390 = vcmp.eq.s32.totalorder %v350, %v266
        %vm391 = vcmp.eq.s32.totalorder %v353, %v266
        %vm392 = vcmp.eq.s32.totalorder %v356, %v266
        %vm393 = vcmp.eq.s32.totalorder %v359, %v266
        %vm394 = vcmp.eq.s32.totalorder %v362, %v266
        %v395 = vsel %vm363, 1, 0
        %v396 = vsel %vm364, 1, 0
        %v397 = vsel %vm365, 1, 0
        %v398 = vsel %vm366, 1, 0
        %v399 = vsel %vm367, 1, 0
        %v400 = vsel %vm368, 1, 0
        %v401 = vsel %vm369, 1, 0
        %v402 = vsel %vm370, 1, 0
        %v403 = vsel %vm371, 1, 0
        %v404 = vsel %vm372, 1, 0
        %v405 = vsel %vm373, 1, 0
        %v406 = vsel %vm374, 1, 0
        %v407 = vsel %vm375, 1, 0
        %v408 = vsel %vm376, 1, 0
        %v409 = vsel %vm377, 1, 0
        %v410 = vsel %vm378, 1, 0
        %v411 = vsel %vm379, 1, 0
        %v412 = vsel %vm380, 1, 0
        %v413 = vsel %vm381, 1, 0
        %v414 = vsel %vm382, 1, 0
        %v415 = vsel %vm383, 1, 0
        %v416 = vsel %vm384, 1, 0
        %v417 = vsel %vm385, 1, 0
        %v418 = vsel %vm386, 1, 0
        %v419 = vsel %vm387, 1, 0
        %v420 = vsel %vm388, 1, 0
        %v421 = vsel %vm389, 1, 0
        %v422 = vsel %vm390, 1, 0
        %v423 = vsel %vm391, 1, 0
        %v424 = vsel %vm392, 1, 0
        %v425 = vsel %vm393, 1, 0
        %v426 = vsel %vm394, 1, 0
        %v427 = vcvt.s32.f32 %v395
        %v428 = vcvt.s32.f32 %v396
        %v429 = vcvt.s32.f32 %v397
        %v430 = vcvt.s32.f32 %v398
        %v431 = vcvt.s32.f32 %v399
        %v432 = vcvt.s32.f32 %v400
        %v433 = vcvt.s32.f32 %v401
        %v434 = vcvt.s32.f32 %v402
        %v435 = vcvt.s32.f32 %v403
        %v436 = vcvt.s32.f32 %v404
        %v437 = vcvt.s32.f32 %v405
        %v438 = vcvt.s32.f32 %v406
        %v439 = vcvt.s32.f32 %v407
        %v440 = vcvt.s32.f32 %v408
        %v441 = vcvt.s32.f32 %v409
        %v442 = vcvt.s32.f32 %v410
        %v443 = vcvt.s32.f32 %v411
        %v444 = vcvt.s32.f32 %v412
        %v445 = vcvt.s32.f32 %v413
        %v446 = vcvt.s32.f32 %v414
        %v447 = vcvt.s32.f32 %v415
        %v448 = vcvt.s32.f32 %v416
        %v449 = vcvt.s32.f32 %v417
        %v450 = vcvt.s32.f32 %v418
        %v451 = vcvt.s32.f32 %v419
        %v452 = vcvt.s32.f32 %v420
        %v453 = vcvt.s32.f32 %v421
        %v454 = vcvt.s32.f32 %v422
        %v455 = vcvt.s32.f32 %v423
        %v456 = vcvt.s32.f32 %v424
        %v457 = vcvt.s32.f32 %v425
        %v458 = vcvt.s32.f32 %v426
        %v459 = vpack.c.bf16 %v428, %v427
        %v460 = vpack.c.bf16 %v430, %v429
        %v461 = vpack.c.bf16 %v432, %v431
        %v462 = vpack.c.bf16 %v434, %v433
        %v463 = vpack.c.bf16 %v436, %v435
        %v464 = vpack.c.bf16 %v438, %v437
        %v465 = vpack.c.bf16 %v440, %v439
        %v466 = vpack.c.bf16 %v442, %v441
        %v467 = vpack.c.bf16 %v444, %v443
        %v468 = vpack.c.bf16 %v446, %v445
        %v469 = vpack.c.bf16 %v448, %v447
        %v470 = vpack.c.bf16 %v450, %v449
        %v471 = vpack.c.bf16 %v452, %v451
        %v472 = vpack.c.bf16 %v454, %v453
        %v473 = vpack.c.bf16 %v456, %v455
        %v474 = vpack.c.bf16 %v458, %v457
        %v475 = vadd.bf16 %v459, 0
        %v476 = vadd.bf16 %v460, 0
        %v477 = vadd.bf16 %v461, 0
        %v478 = vadd.bf16 %v462, 0
        %v479 = vadd.bf16 %v463, 0
        %v480 = vadd.bf16 %v464, 0
        %v481 = vadd.bf16 %v465, 0
        %v482 = vadd.bf16 %v466, 0
        %v483 = vadd.bf16 %v467, 0
        %v484 = vadd.bf16 %v468, 0
        %v485 = vadd.bf16 %v469, 0
        %v486 = vadd.bf16 %v470, 0
        %v487 = vadd.bf16 %v471, 0
        %v488 = vadd.bf16 %v472, 0
        %v489 = vadd.bf16 %v473, 0
        %v490 = vadd.bf16 %v474, 0
        %491 = vset.pattern.permute.xlu0 1
        %492 = vperm.xlu0 %491, %v233
        %v493 = vpop.permute.xlu0 %492
        %494 = vset.pattern.permute.xlu0 1
        %495 = vperm.xlu0 %494, %v234
        %v496 = vpop.permute.xlu0 %495
        %497 = vset.pattern.permute.xlu0 1
        %498 = vperm.xlu0 %497, %v235
        %v499 = vpop.permute.xlu0 %498
        %500 = vset.pattern.permute.xlu0 1
        %501 = vperm.xlu0 %500, %v236
        %v502 = vpop.permute.xlu0 %501
        %503 = vset.pattern.permute.xlu0 1
        %504 = vperm.xlu0 %503, %v237
        %v505 = vpop.permute.xlu0 %504
        %506 = vset.pattern.permute.xlu0 1
        %507 = vperm.xlu0 %506, %v238
        %v508 = vpop.permute.xlu0 %507
        %509 = vset.pattern.permute.xlu0 1
        %510 = vperm.xlu0 %509, %v239
        %v511 = vpop.permute.xlu0 %510
        %512 = vset.pattern.permute.xlu0 1
        %513 = vperm.xlu0 %512, %v240
        %v514 = vpop.permute.xlu0 %513
        %515 = vset.pattern.permute.xlu0 1
        %516 = vperm.xlu0 %515, %v241
        %v517 = vpop.permute.xlu0 %516
        %518 = vset.pattern.permute.xlu0 1
        %519 = vperm.xlu0 %518, %v242
        %v520 = vpop.permute.xlu0 %519
        %521 = vset.pattern.permute.xlu0 1
        %522 = vperm.xlu0 %521, %v243
        %v523 = vpop.permute.xlu0 %522
        %524 = vset.pattern.permute.xlu0 1
        %525 = vperm.xlu0 %524, %v244
        %v526 = vpop.permute.xlu0 %525
        %527 = vset.pattern.permute.xlu0 1
        %528 = vperm.xlu0 %527, %v245
        %v529 = vpop.permute.xlu0 %528
        %530 = vset.pattern.permute.xlu0 1
        %531 = vperm.xlu0 %530, %v246
        %v532 = vpop.permute.xlu0 %531
        %533 = vset.pattern.permute.xlu0 1
        %534 = vperm.xlu0 %533, %v247
        %v535 = vpop.permute.xlu0 %534
        %536 = vset.pattern.permute.xlu0 1
        %537 = vperm.xlu0 %536, %v248
        %v538 = vpop.permute.xlu0 %537
        %539 = vset.pattern.permute.xlu0 1
        %540 = vperm.xlu0 %539, %v249
        %v541 = vpop.permute.xlu0 %540
        %542 = vset.pattern.permute.xlu0 1
        %543 = vperm.xlu0 %542, %v250
        %v544 = vpop.permute.xlu0 %543
        %545 = vset.pattern.permute.xlu0 1
        %546 = vperm.xlu0 %545, %v251
        %v547 = vpop.permute.xlu0 %546
        %548 = vset.pattern.permute.xlu0 1
        %549 = vperm.xlu0 %548, %v252
        %v550 = vpop.permute.xlu0 %549
        %551 = vset.pattern.permute.xlu0 1
        %552 = vperm.xlu0 %551, %v253
        %v553 = vpop.permute.xlu0 %552
        %554 = vset.pattern.permute.xlu0 1
        %555 = vperm.xlu0 %554, %v254
        %v556 = vpop.permute.xlu0 %555
        %557 = vset.pattern.permute.xlu0 1
        %558 = vperm.xlu0 %557, %v255
        %v559 = vpop.permute.xlu0 %558
        %560 = vset.pattern.permute.xlu0 1
        %561 = vperm.xlu0 %560, %v256
        %v562 = vpop.permute.xlu0 %561
        %563 = vset.pattern.permute.xlu0 1
        %564 = vperm.xlu0 %563, %v257
        %v565 = vpop.permute.xlu0 %564
        %566 = vset.pattern.permute.xlu0 1
        %567 = vperm.xlu0 %566, %v258
        %v568 = vpop.permute.xlu0 %567
        %569 = vset.pattern.permute.xlu0 1
        %570 = vperm.xlu0 %569, %v259
        %v571 = vpop.permute.xlu0 %570
        %572 = vset.pattern.permute.xlu0 1
        %573 = vperm.xlu0 %572, %v260
        %v574 = vpop.permute.xlu0 %573
        %575 = vset.pattern.permute.xlu0 1
        %576 = vperm.xlu0 %575, %v261
        %v577 = vpop.permute.xlu0 %576
        %578 = vset.pattern.permute.xlu0 1
        %579 = vperm.xlu0 %578, %v262
        %v580 = vpop.permute.xlu0 %579
        %581 = vset.pattern.permute.xlu0 1
        %582 = vperm.xlu0 %581, %v263
        %v583 = vpop.permute.xlu0 %582
        %584 = vset.pattern.permute.xlu0 1
        %585 = vperm.xlu0 %584, %v264
        %v586 = vpop.permute.xlu0 %585
        %vm587 = vcmp.eq.s32.totalorder %v493, %v266
        %vm588 = vcmp.eq.s32.totalorder %v496, %v266
        %vm589 = vcmp.eq.s32.totalorder %v499, %v266
        %vm590 = vcmp.eq.s32.totalorder %v502, %v266
        %vm591 = vcmp.eq.s32.totalorder %v505, %v266
        %vm592 = vcmp.eq.s32.totalorder %v508, %v266
        %vm593 = vcmp.eq.s32.totalorder %v511, %v266
        %vm594 = vcmp.eq.s32.totalorder %v514, %v266
        %vm595 = vcmp.eq.s32.totalorder %v517, %v266
        %vm596 = vcmp.eq.s32.totalorder %v520, %v266
        %vm597 = vcmp.eq.s32.totalorder %v523, %v266
        %vm598 = vcmp.eq.s32.totalorder %v526, %v266
        %vm599 = vcmp.eq.s32.totalorder %v529, %v266
        %vm600 = vcmp.eq.s32.totalorder %v532, %v266
        %vm601 = vcmp.eq.s32.totalorder %v535, %v266
        %vm602 = vcmp.eq.s32.totalorder %v538, %v266
        %vm603 = vcmp.eq.s32.totalorder %v541, %v266
        %vm604 = vcmp.eq.s32.totalorder %v544, %v266
        %vm605 = vcmp.eq.s32.totalorder %v547, %v266
        %vm606 = vcmp.eq.s32.totalorder %v550, %v266
        %vm607 = vcmp.eq.s32.totalorder %v553, %v266
        %vm608 = vcmp.eq.s32.totalorder %v556, %v266
        %vm609 = vcmp.eq.s32.totalorder %v559, %v266
        %vm610 = vcmp.eq.s32.totalorder %v562, %v266
        %vm611 = vcmp.eq.s32.totalorder %v565, %v266
        %vm612 = vcmp.eq.s32.totalorder %v568, %v266
        %vm613 = vcmp.eq.s32.totalorder %v571, %v266
        %vm614 = vcmp.eq.s32.totalorder %v574, %v266
        %vm615 = vcmp.eq.s32.totalorder %v577, %v266
        %vm616 = vcmp.eq.s32.totalorder %v580, %v266
        %vm617 = vcmp.eq.s32.totalorder %v583, %v266
        %vm618 = vcmp.eq.s32.totalorder %v586, %v266
        %v619 = vsel %vm587, 1, 0
        %v620 = vsel %vm588, 1, 0
        %v621 = vsel %vm589, 1, 0
        %v622 = vsel %vm590, 1, 0
        %v623 = vsel %vm591, 1, 0
        %v624 = vsel %vm592, 1, 0
        %v625 = vsel %vm593, 1, 0
        %v626 = vsel %vm594, 1, 0
        %v627 = vsel %vm595, 1, 0
        %v628 = vsel %vm596, 1, 0
        %v629 = vsel %vm597, 1, 0
        %v630 = vsel %vm598, 1, 0
        %v631 = vsel %vm599, 1, 0
        %v632 = vsel %vm600, 1, 0
        %v633 = vsel %vm601, 1, 0
        %v634 = vsel %vm602, 1, 0
        %v635 = vsel %vm603, 1, 0
        %v636 = vsel %vm604, 1, 0
        %v637 = vsel %vm605, 1, 0
        %v638 = vsel %vm606, 1, 0
        %v639 = vsel %vm607, 1, 0
        %v640 = vsel %vm608, 1, 0
        %v641 = vsel %vm609, 1, 0
        %v642 = vsel %vm610, 1, 0
        %v643 = vsel %vm611, 1, 0
        %v644 = vsel %vm612, 1, 0
        %v645 = vsel %vm613, 1, 0
        %v646 = vsel %vm614, 1, 0
        %v647 = vsel %vm615, 1, 0
        %v648 = vsel %vm616, 1, 0
        %v649 = vsel %vm617, 1, 0
        %v650 = vsel %vm618, 1, 0
        %v651 = vcvt.s32.f32 %v619
        %v652 = vcvt.s32.f32 %v620
        %v653 = vcvt.s32.f32 %v621
        %v654 = vcvt.s32.f32 %v622
        %v655 = vcvt.s32.f32 %v623
        %v656 = vcvt.s32.f32 %v624
        %v657 = vcvt.s32.f32 %v625
        %v658 = vcvt.s32.f32 %v626
        %v659 = vcvt.s32.f32 %v627
        %v660 = vcvt.s32.f32 %v628
        %v661 = vcvt.s32.f32 %v629
        %v662 = vcvt.s32.f32 %v630
        %v663 = vcvt.s32.f32 %v631
        %v664 = vcvt.s32.f32 %v632
        %v665 = vcvt.s32.f32 %v633
        %v666 = vcvt.s32.f32 %v634
        %v667 = vcvt.s32.f32 %v635
        %v668 = vcvt.s32.f32 %v636
        %v669 = vcvt.s32.f32 %v637
        %v670 = vcvt.s32.f32 %v638
        %v671 = vcvt.s32.f32 %v639
        %v672 = vcvt.s32.f32 %v640
        %v673 = vcvt.s32.f32 %v641
        %v674 = vcvt.s32.f32 %v642
        %v675 = vcvt.s32.f32 %v643
        %v676 = vcvt.s32.f32 %v644
        %v677 = vcvt.s32.f32 %v645
        %v678 = vcvt.s32.f32 %v646
        %v679 = vcvt.s32.f32 %v647
        %v680 = vcvt.s32.f32 %v648
        %v681 = vcvt.s32.f32 %v649
        %v682 = vcvt.s32.f32 %v650
        %v683 = vpack.c.bf16 %v652, %v651
        %v684 = vpack.c.bf16 %v654, %v653
        %v685 = vpack.c.bf16 %v656, %v655
        %v686 = vpack.c.bf16 %v658, %v657
        %v687 = vpack.c.bf16 %v660, %v659
        %v688 = vpack.c.bf16 %v662, %v661
        %v689 = vpack.c.bf16 %v664, %v663
        %v690 = vpack.c.bf16 %v666, %v665
        %v691 = vpack.c.bf16 %v668, %v667
        %v692 = vpack.c.bf16 %v670, %v669
        %v693 = vpack.c.bf16 %v672, %v671
        %v694 = vpack.c.bf16 %v674, %v673
        %v695 = vpack.c.bf16 %v676, %v675
        %v696 = vpack.c.bf16 %v678, %v677
        %v697 = vpack.c.bf16 %v680, %v679
        %v698 = vpack.c.bf16 %v682, %v681
        %v699 = vadd.bf16 %v475, %v683
        %v700 = vadd.bf16 %v476, %v684
        %v701 = vadd.bf16 %v477, %v685
        %v702 = vadd.bf16 %v478, %v686
        %v703 = vadd.bf16 %v479, %v687
        %v704 = vadd.bf16 %v480, %v688
        %v705 = vadd.bf16 %v481, %v689
        %v706 = vadd.bf16 %v482, %v690
        %v707 = vadd.bf16 %v483, %v691
        %v708 = vadd.bf16 %v484, %v692
        %v709 = vadd.bf16 %v485, %v693
        %v710 = vadd.bf16 %v486, %v694
        %v711 = vadd.bf16 %v487, %v695
        %v712 = vadd.bf16 %v488, %v696
        %v713 = vadd.bf16 %v489, %v697
        %v714 = vadd.bf16 %v490, %v698
        %715 = vset.pattern.permute.xlu0 2
        %716 = vperm.xlu0 %715, %v233
        %v717 = vpop.permute.xlu0 %716
        %718 = vset.pattern.permute.xlu0 2
        %719 = vperm.xlu0 %718, %v234
        %v720 = vpop.permute.xlu0 %719
        %721 = vset.pattern.permute.xlu0 2
        %722 = vperm.xlu0 %721, %v235
        %v723 = vpop.permute.xlu0 %722
        %724 = vset.pattern.permute.xlu0 2
        %725 = vperm.xlu0 %724, %v236
        %v726 = vpop.permute.xlu0 %725
        %727 = vset.pattern.permute.xlu0 2
        %728 = vperm.xlu0 %727, %v237
        %v729 = vpop.permute.xlu0 %728
        %730 = vset.pattern.permute.xlu0 2
        %731 = vperm.xlu0 %730, %v238
        %v732 = vpop.permute.xlu0 %731
        %733 = vset.pattern.permute.xlu0 2
        %734 = vperm.xlu0 %733, %v239
        %v735 = vpop.permute.xlu0 %734
        %736 = vset.pattern.permute.xlu0 2
        %737 = vperm.xlu0 %736, %v240
        %v738 = vpop.permute.xlu0 %737
        %739 = vset.pattern.permute.xlu0 2
        %740 = vperm.xlu0 %739, %v241
        %v741 = vpop.permute.xlu0 %740
        %742 = vset.pattern.permute.xlu0 2
        %743 = vperm.xlu0 %742, %v242
        %v744 = vpop.permute.xlu0 %743
        %745 = vset.pattern.permute.xlu0 2
        %746 = vperm.xlu0 %745, %v243
        %v747 = vpop.permute.xlu0 %746
        %748 = vset.pattern.permute.xlu0 2
        %749 = vperm.xlu0 %748, %v244
        %v750 = vpop.permute.xlu0 %749
        %751 = vset.pattern.permute.xlu0 2
        %752 = vperm.xlu0 %751, %v245
        %v753 = vpop.permute.xlu0 %752
        %754 = vset.pattern.permute.xlu0 2
        %755 = vperm.xlu0 %754, %v246
        %v756 = vpop.permute.xlu0 %755
        %757 = vset.pattern.permute.xlu0 2
        %758 = vperm.xlu0 %757, %v247
        %v759 = vpop.permute.xlu0 %758
        %760 = vset.pattern.permute.xlu0 2
        %761 = vperm.xlu0 %760, %v248
        %v762 = vpop.permute.xlu0 %761
        %763 = vset.pattern.permute.xlu0 2
        %764 = vperm.xlu0 %763, %v249
        %v765 = vpop.permute.xlu0 %764
        %766 = vset.pattern.permute.xlu0 2
        %767 = vperm.xlu0 %766, %v250
        %v768 = vpop.permute.xlu0 %767
        %769 = vset.pattern.permute.xlu0 2
        %770 = vperm.xlu0 %769, %v251
        %v771 = vpop.permute.xlu0 %770
        %772 = vset.pattern.permute.xlu0 2
        %773 = vperm.xlu0 %772, %v252
        %v774 = vpop.permute.xlu0 %773
        %775 = vset.pattern.permute.xlu0 2
        %776 = vperm.xlu0 %775, %v253
        %v777 = vpop.permute.xlu0 %776
        %778 = vset.pattern.permute.xlu0 2
        %779 = vperm.xlu0 %778, %v254
        %v780 = vpop.permute.xlu0 %779
        %781 = vset.pattern.permute.xlu0 2
        %782 = vperm.xlu0 %781, %v255
        %v783 = vpop.permute.xlu0 %782
        %784 = vset.pattern.permute.xlu0 2
        %785 = vperm.xlu0 %784, %v256
        %v786 = vpop.permute.xlu0 %785
        %787 = vset.pattern.permute.xlu0 2
        %788 = vperm.xlu0 %787, %v257
        %v789 = vpop.permute.xlu0 %788
        %790 = vset.pattern.permute.xlu0 2
        %791 = vperm.xlu0 %790, %v258
        %v792 = vpop.permute.xlu0 %791
        %793 = vset.pattern.permute.xlu0 2
        %794 = vperm.xlu0 %793, %v259
        %v795 = vpop.permute.xlu0 %794
        %796 = vset.pattern.permute.xlu0 2
        %797 = vperm.xlu0 %796, %v260
        %v798 = vpop.permute.xlu0 %797
        %799 = vset.pattern.permute.xlu0 2
        %800 = vperm.xlu0 %799, %v261
        %v801 = vpop.permute.xlu0 %800
        %802 = vset.pattern.permute.xlu0 2
        %803 = vperm.xlu0 %802, %v262
        %v804 = vpop.permute.xlu0 %803
        %805 = vset.pattern.permute.xlu0 2
        %806 = vperm.xlu0 %805, %v263
        %v807 = vpop.permute.xlu0 %806
        %808 = vset.pattern.permute.xlu0 2
        %809 = vperm.xlu0 %808, %v264
        %v810 = vpop.permute.xlu0 %809
        %vm811 = vcmp.eq.s32.totalorder %v717, %v266
        %vm812 = vcmp.eq.s32.totalorder %v720, %v266
        %vm813 = vcmp.eq.s32.totalorder %v723, %v266
        %vm814 = vcmp.eq.s32.totalorder %v726, %v266
        %vm815 = vcmp.eq.s32.totalorder %v729, %v266
        %vm816 = vcmp.eq.s32.totalorder %v732, %v266
        %vm817 = vcmp.eq.s32.totalorder %v735, %v266
        %vm818 = vcmp.eq.s32.totalorder %v738, %v266
        %vm819 = vcmp.eq.s32.totalorder %v741, %v266
        %vm820 = vcmp.eq.s32.totalorder %v744, %v266
        %vm821 = vcmp.eq.s32.totalorder %v747, %v266
        %vm822 = vcmp.eq.s32.totalorder %v750, %v266
        %vm823 = vcmp.eq.s32.totalorder %v753, %v266
        %vm824 = vcmp.eq.s32.totalorder %v756, %v266
        %vm825 = vcmp.eq.s32.totalorder %v759, %v266
        %vm826 = vcmp.eq.s32.totalorder %v762, %v266
        %vm827 = vcmp.eq.s32.totalorder %v765, %v266
        %vm828 = vcmp.eq.s32.totalorder %v768, %v266
        %vm829 = vcmp.eq.s32.totalorder %v771, %v266
        %vm830 = vcmp.eq.s32.totalorder %v774, %v266
        %vm831 = vcmp.eq.s32.totalorder %v777, %v266
        %vm832 = vcmp.eq.s32.totalorder %v780, %v266
        %vm833 = vcmp.eq.s32.totalorder %v783, %v266
        %vm834 = vcmp.eq.s32.totalorder %v786, %v266
        %vm835 = vcmp.eq.s32.totalorder %v789, %v266
        %vm836 = vcmp.eq.s32.totalorder %v792, %v266
        %vm837 = vcmp.eq.s32.totalorder %v795, %v266
        %vm838 = vcmp.eq.s32.totalorder %v798, %v266
        %vm839 = vcmp.eq.s32.totalorder %v801, %v266
        %vm840 = vcmp.eq.s32.totalorder %v804, %v266
        %vm841 = vcmp.eq.s32.totalorder %v807, %v266
        %vm842 = vcmp.eq.s32.totalorder %v810, %v266
        %v843 = vsel %vm811, 1, 0
        %v844 = vsel %vm812, 1, 0
        %v845 = vsel %vm813, 1, 0
        %v846 = vsel %vm814, 1, 0
        %v847 = vsel %vm815, 1, 0
        %v848 = vsel %vm816, 1, 0
        %v849 = vsel %vm817, 1, 0
        %v850 = vsel %vm818, 1, 0
        %v851 = vsel %vm819, 1, 0
        %v852 = vsel %vm820, 1, 0
        %v853 = vsel %vm821, 1, 0
        %v854 = vsel %vm822, 1, 0
        %v855 = vsel %vm823, 1, 0
        %v856 = vsel %vm824, 1, 0
        %v857 = vsel %vm825, 1, 0
        %v858 = vsel %vm826, 1, 0
        %v859 = vsel %vm827, 1, 0
        %v860 = vsel %vm828, 1, 0
        %v861 = vsel %vm829, 1, 0
        %v862 = vsel %vm830, 1, 0
        %v863 = vsel %vm831, 1, 0
        %v864 = vsel %vm832, 1, 0
        %v865 = vsel %vm833, 1, 0
        %v866 = vsel %vm834, 1, 0
        %v867 = vsel %vm835, 1, 0
        %v868 = vsel %vm836, 1, 0
        %v869 = vsel %vm837, 1, 0
        %v870 = vsel %vm838, 1, 0
        %v871 = vsel %vm839, 1, 0
        %v872 = vsel %vm840, 1, 0
        %v873 = vsel %vm841, 1, 0
        %v874 = vsel %vm842, 1, 0
        %v875 = vcvt.s32.f32 %v843
        %v876 = vcvt.s32.f32 %v844
        %v877 = vcvt.s32.f32 %v845
        %v878 = vcvt.s32.f32 %v846
        %v879 = vcvt.s32.f32 %v847
        %v880 = vcvt.s32.f32 %v848
        %v881 = vcvt.s32.f32 %v849
        %v882 = vcvt.s32.f32 %v850
        %v883 = vcvt.s32.f32 %v851
        %v884 = vcvt.s32.f32 %v852
        %v885 = vcvt.s32.f32 %v853
        %v886 = vcvt.s32.f32 %v854
        %v887 = vcvt.s32.f32 %v855
        %v888 = vcvt.s32.f32 %v856
        %v889 = vcvt.s32.f32 %v857
        %v890 = vcvt.s32.f32 %v858
        %v891 = vcvt.s32.f32 %v859
        %v892 = vcvt.s32.f32 %v860
        %v893 = vcvt.s32.f32 %v861
        %v894 = vcvt.s32.f32 %v862
        %v895 = vcvt.s32.f32 %v863
        %v896 = vcvt.s32.f32 %v864
        %v897 = vcvt.s32.f32 %v865
        %v898 = vcvt.s32.f32 %v866
        %v899 = vcvt.s32.f32 %v867
        %v900 = vcvt.s32.f32 %v868
        %v901 = vcvt.s32.f32 %v869
        %v902 = vcvt.s32.f32 %v870
        %v903 = vcvt.s32.f32 %v871
        %v904 = vcvt.s32.f32 %v872
        %v905 = vcvt.s32.f32 %v873
        %v906 = vcvt.s32.f32 %v874
        %v907 = vpack.c.bf16 %v876, %v875
        %v908 = vpack.c.bf16 %v878, %v877
        %v909 = vpack.c.bf16 %v880, %v879
        %v910 = vpack.c.bf16 %v882, %v881
        %v911 = vpack.c.bf16 %v884, %v883
        %v912 = vpack.c.bf16 %v886, %v885
        %v913 = vpack.c.bf16 %v888, %v887
        %v914 = vpack.c.bf16 %v890, %v889
        %v915 = vpack.c.bf16 %v892, %v891
        %v916 = vpack.c.bf16 %v894, %v893
        %v917 = vpack.c.bf16 %v896, %v895
        %v918 = vpack.c.bf16 %v898, %v897
        %v919 = vpack.c.bf16 %v900, %v899
        %v920 = vpack.c.bf16 %v902, %v901
        %v921 = vpack.c.bf16 %v904, %v903
        %v922 = vpack.c.bf16 %v906, %v905
        %v923 = vadd.bf16 %v699, %v907
        %v924 = vadd.bf16 %v700, %v908
        %v925 = vadd.bf16 %v701, %v909
        %v926 = vadd.bf16 %v702, %v910
        %v927 = vadd.bf16 %v703, %v911
        %v928 = vadd.bf16 %v704, %v912
        %v929 = vadd.bf16 %v705, %v913
        %v930 = vadd.bf16 %v706, %v914
        %v931 = vadd.bf16 %v707, %v915
        %v932 = vadd.bf16 %v708, %v916
        %v933 = vadd.bf16 %v709, %v917
        %v934 = vadd.bf16 %v710, %v918
        %v935 = vadd.bf16 %v711, %v919
        %v936 = vadd.bf16 %v712, %v920
        %v937 = vadd.bf16 %v713, %v921
        %v938 = vadd.bf16 %v714, %v922
        %v939 = vld [vmem:[%s1] sm:$0xf]
        %v940 = vld [vmem:[%s1 + $0x4] sm:$0xf]
        %v941 = vld [vmem:[%s1 + $0x8] sm:$0xf]
        %v942 = vld [vmem:[%s1 + $0xc] sm:$0xf]
        %v943 = vld [vmem:[%s1 + $0x10] sm:$0xf]
        %v944 = vld [vmem:[%s1 + $0x14] sm:$0xf]
        %v945 = vld [vmem:[%s1 + $0x18] sm:$0xf]
        %v946 = vld [vmem:[%s1 + $0x1c] sm:$0xf]
        %v947 = vld [vmem:[%s1 + $0x20] sm:$0xf]
        %v948 = vld [vmem:[%s1 + $0x24] sm:$0xf]
        %v949 = vld [vmem:[%s1 + $0x28] sm:$0xf]
        %v950 = vld [vmem:[%s1 + $0x2c] sm:$0xf]
        %v951 = vld [vmem:[%s1 + $0x30] sm:$0xf]
        %v952 = vld [vmem:[%s1 + $0x34] sm:$0xf]
        %v953 = vld [vmem:[%s1 + $0x38] sm:$0xf]
        %v954 = vld [vmem:[%s1 + $0x3c] sm:$0xf]
        %v955 = vld [vmem:[%s2] sm:$0x1]
        %v957 = vlaneseq
        %v958 = vshrl.u32 %v957, 7
        %v959 = vsub.s32 0, %v958
        %v960 = vrot.slane %v955, %v959
        %v978 = vunpack.c.l.b16 %v939
        %v979 = vunpack.c.l.b16 %v940
        %v980 = vunpack.c.l.b16 %v941
        %v981 = vunpack.c.l.b16 %v942
        %v982 = vunpack.c.l.b16 %v943
        %v983 = vunpack.c.l.b16 %v944
        %v984 = vunpack.c.l.b16 %v945
        %v985 = vunpack.c.l.b16 %v946
        %v986 = vunpack.c.l.b16 %v947
        %v987 = vunpack.c.l.b16 %v948
        %v988 = vunpack.c.l.b16 %v949
        %v989 = vunpack.c.l.b16 %v950
        %v990 = vunpack.c.l.b16 %v951
        %v991 = vunpack.c.l.b16 %v952
        %v992 = vunpack.c.l.b16 %v953
        %v993 = vunpack.c.l.b16 %v954
        %v994 = vpack.c.b16 %v979, %v978
        %v995 = vpack.c.b16 %v981, %v980
        %v996 = vpack.c.b16 %v983, %v982
        %v997 = vpack.c.b16 %v985, %v984
        %v998 = vpack.c.b16 %v987, %v986
        %v999 = vpack.c.b16 %v989, %v988
        %v1000 = vpack.c.b16 %v991, %v990
        %v1001 = vpack.c.b16 %v993, %v992
        %1010 = vmatprep.subr.bf16.mxu0 0
        %1011 = vmatpush1.bf16.msra.mxu0 %v1001
        %1012 = vmatprep.subr.bf16.mxu0 0
        %1013 = vmatpush1.bf16.msra.mxu0 %v1000
        %1014 = vmatprep.subr.bf16.mxu0 0
        %1015 = vmatpush1.bf16.msra.mxu0 %v999
        %1016 = vmatprep.subr.bf16.mxu0 0
        %1017 = vmatpush1.bf16.msra.mxu0 %v998
        %1018 = vmatprep.subr.bf16.mxu0 0
        %1019 = vmatpush1.bf16.msra.mxu0 %v997
        %1020 = vmatprep.subr.bf16.mxu0 0
        %1021 = vmatpush1.bf16.msra.mxu0 %v996
        %1022 = vmatprep.subr.bf16.mxu0 0
        %1023 = vmatpush1.bf16.msra.mxu0 %v995
        %1024 = vmatprep.subr.bf16.mxu0 0
        %1025 = vmatpush1.bf16.msra.mxu0 %v994
        %1026 = vmatprep.subr.bf16.mxu0 0
        %1027 = vmatpush2.bf16.msra.mxu0 0
        %1028 = vmatprep.subr.bf16.mxu0 0
        %1029 = vmatpush2.bf16.msra.mxu0 0
        %1030 = vmatprep.subr.bf16.mxu0 0
        %1031 = vmatpush2.bf16.msra.mxu0 0
        %1032 = vmatprep.subr.bf16.mxu0 0
        %1033 = vmatpush2.bf16.msra.mxu0 0
        %1034 = vmatprep.subr.bf16.mxu0 0
        %1035 = vmatpush2.bf16.msra.mxu0 0
        %1036 = vmatprep.subr.bf16.mxu0 0
        %1037 = vmatpush2.bf16.msra.mxu0 0
        %1038 = vmatprep.subr.bf16.mxu0 0
        %1039 = vmatpush2.bf16.msra.mxu0 0
        %1040 = vmatprep.subr.bf16.mxu0 0
        %1041 = vmatpush2.bf16.msra.mxu0 0
        %1042 = vmatprep.mubr.bf16.mxu0 0
        %1043 = vmatmul.mubr.bf16.gmra.mxu0 %v923
        %v1044 = vpop.f32.mrf.mxu0
        %v1045 = vadd.f32 %v960, %v1044
        %v1046 = vpop.f32.mrf.mxu0
        %v1047 = vpop.f32.mrf.mxu0
        %v1048 = vadd.f32 %v960, %v1047
        %v1049 = vpop.f32.mrf.mxu0
        %1050 = vmatprep.mubr.bf16.mxu0 0
        %1051 = vmatmul.mubr.bf16.gmra.mxu0 %v924
        %v1052 = vpop.f32.mrf.mxu0
        %v1053 = vadd.f32 %v960, %v1052
        %v1054 = vpop.f32.mrf.mxu0
        %v1055 = vpop.f32.mrf.mxu0
        %v1056 = vadd.f32 %v960, %v1055
        %v1057 = vpop.f32.mrf.mxu0
        %1058 = vmatprep.mubr.bf16.mxu0 0
        %1059 = vmatmul.mubr.bf16.gmra.mxu0 %v925
        %v1060 = vpop.f32.mrf.mxu0
        %v1061 = vadd.f32 %v960, %v1060
        %v1062 = vpop.f32.mrf.mxu0
        %v1063 = vpop.f32.mrf.mxu0
        %v1064 = vadd.f32 %v960, %v1063
        %v1065 = vpop.f32.mrf.mxu0
        %1066 = vmatprep.mubr.bf16.mxu0 0
        %1067 = vmatmul.mubr.bf16.gmra.mxu0 %v926
        %v1068 = vpop.f32.mrf.mxu0
        %v1069 = vadd.f32 %v960, %v1068
        %v1070 = vpop.f32.mrf.mxu0
        %v1071 = vpop.f32.mrf.mxu0
        %v1072 = vadd.f32 %v960, %v1071
        %v1073 = vpop.f32.mrf.mxu0
        %1074 = vmatprep.mubr.bf16.mxu0 0
        %1075 = vmatmul.mubr.bf16.gmra.mxu0 %v927
        %v1076 = vpop.f32.mrf.mxu0
        %v1077 = vadd.f32 %v960, %v1076
        %v1078 = vpop.f32.mrf.mxu0
        %v1079 = vpop.f32.mrf.mxu0
        %v1080 = vadd.f32 %v960, %v1079
        %v1081 = vpop.f32.mrf.mxu0
        %1082 = vmatprep.mubr.bf16.mxu0 0
        %1083 = vmatmul.mubr.bf16.gmra.mxu0 %v928
        %v1084 = vpop.f32.mrf.mxu0
        %v1085 = vadd.f32 %v960, %v1084
        %v1086 = vpop.f32.mrf.mxu0
        %v1087 = vpop.f32.mrf.mxu0
        %v1088 = vadd.f32 %v960, %v1087
        %v1089 = vpop.f32.mrf.mxu0
        %1090 = vmatprep.mubr.bf16.mxu0 0
        %1091 = vmatmul.mubr.bf16.gmra.mxu0 %v929
        %v1092 = vpop.f32.mrf.mxu0
        %v1093 = vadd.f32 %v960, %v1092
        %v1094 = vpop.f32.mrf.mxu0
        %v1095 = vpop.f32.mrf.mxu0
        %v1096 = vadd.f32 %v960, %v1095
        %v1097 = vpop.f32.mrf.mxu0
        %1098 = vmatprep.mubr.bf16.mxu0 0
        %1099 = vmatmul.mubr.bf16.gmra.mxu0 %v930
        %v1100 = vpop.f32.mrf.mxu0
        %v1101 = vadd.f32 %v960, %v1100
        %v1102 = vpop.f32.mrf.mxu0
        %v1103 = vpop.f32.mrf.mxu0
        %v1104 = vadd.f32 %v960, %v1103
        %v1105 = vpop.f32.mrf.mxu0
        %1106 = vmatprep.mubr.bf16.mxu0 0
        %1107 = vmatmul.mubr.bf16.gmra.mxu0 %v931
        %v1108 = vpop.f32.mrf.mxu0
        %v1109 = vadd.f32 %v960, %v1108
        %v1110 = vpop.f32.mrf.mxu0
        %v1111 = vpop.f32.mrf.mxu0
        %v1112 = vadd.f32 %v960, %v1111
        %v1113 = vpop.f32.mrf.mxu0
        %1114 = vmatprep.mubr.bf16.mxu0 0
        %1115 = vmatmul.mubr.bf16.gmra.mxu0 %v932
        %v1116 = vpop.f32.mrf.mxu0
        %v1117 = vadd.f32 %v960, %v1116
        %v1118 = vpop.f32.mrf.mxu0
        %v1119 = vpop.f32.mrf.mxu0
        %v1120 = vadd.f32 %v960, %v1119
        %v1121 = vpop.f32.mrf.mxu0
        %1122 = vmatprep.mubr.bf16.mxu0 0
        %1123 = vmatmul.mubr.bf16.gmra.mxu0 %v933
        %v1124 = vpop.f32.mrf.mxu0
        %v1125 = vadd.f32 %v960, %v1124
        %v1126 = vpop.f32.mrf.mxu0
        %v1127 = vpop.f32.mrf.mxu0
        %v1128 = vadd.f32 %v960, %v1127
        %v1129 = vpop.f32.mrf.mxu0
        %1130 = vmatprep.mubr.bf16.mxu0 0
        %1131 = vmatmul.mubr.bf16.gmra.mxu0 %v934
        %v1132 = vpop.f32.mrf.mxu0
        %v1133 = vadd.f32 %v960, %v1132
        %v1134 = vpop.f32.mrf.mxu0
        %v1135 = vpop.f32.mrf.mxu0
        %v1136 = vadd.f32 %v960, %v1135
        %v1137 = vpop.f32.mrf.mxu0
        %1138 = vmatprep.mubr.bf16.mxu0 0
        %1139 = vmatmul.mubr.bf16.gmra.mxu0 %v935
        %v1140 = vpop.f32.mrf.mxu0
        %v1141 = vadd.f32 %v960, %v1140
        %v1142 = vpop.f32.mrf.mxu0
        %v1143 = vpop.f32.mrf.mxu0
        %v1144 = vadd.f32 %v960, %v1143
        %v1145 = vpop.f32.mrf.mxu0
        %1146 = vmatprep.mubr.bf16.mxu0 0
        %1147 = vmatmul.mubr.bf16.gmra.mxu0 %v936
        %v1148 = vpop.f32.mrf.mxu0
        %v1149 = vadd.f32 %v960, %v1148
        %v1150 = vpop.f32.mrf.mxu0
        %v1151 = vpop.f32.mrf.mxu0
        %v1152 = vadd.f32 %v960, %v1151
        %v1153 = vpop.f32.mrf.mxu0
        %1154 = vmatprep.mubr.bf16.mxu0 0
        %1155 = vmatmul.mubr.bf16.gmra.mxu0 %v937
        %v1156 = vpop.f32.mrf.mxu0
        %v1157 = vadd.f32 %v960, %v1156
        %v1158 = vpop.f32.mrf.mxu0
        %v1159 = vpop.f32.mrf.mxu0
        %v1160 = vadd.f32 %v960, %v1159
        %v1161 = vpop.f32.mrf.mxu0
        %1162 = vmatprep.mubr.bf16.mxu0 0
        %1163 = vmatmul.mubr.bf16.gmra.mxu0 %v938
        %v1164 = vpop.f32.mrf.mxu0
        %v1165 = vadd.f32 %v960, %v1164
        %v1166 = vpop.f32.mrf.mxu0
        %v1167 = vpop.f32.mrf.mxu0
        %v1168 = vadd.f32 %v960, %v1167
        %v1169 = vpop.f32.mrf.mxu0
        %1170 = vdwg.mxu0
        %v1171 = vmax.f32 %v1045, 0.0
        %v1172 = vmax.f32 %v1048, 0.0
        %v1173 = vmax.f32 %v1053, 0.0
        %v1174 = vmax.f32 %v1056, 0.0
        %v1175 = vmax.f32 %v1061, 0.0
        %v1176 = vmax.f32 %v1064, 0.0
        %v1177 = vmax.f32 %v1069, 0.0
        %v1178 = vmax.f32 %v1072, 0.0
        %v1179 = vmax.f32 %v1077, 0.0
        %v1180 = vmax.f32 %v1080, 0.0
        %v1181 = vmax.f32 %v1085, 0.0
        %v1182 = vmax.f32 %v1088, 0.0
        %v1183 = vmax.f32 %v1093, 0.0
        %v1184 = vmax.f32 %v1096, 0.0
        %v1185 = vmax.f32 %v1101, 0.0
        %v1186 = vmax.f32 %v1104, 0.0
        %v1187 = vmax.f32 %v1109, 0.0
        %v1188 = vmax.f32 %v1112, 0.0
        %v1189 = vmax.f32 %v1117, 0.0
        %v1190 = vmax.f32 %v1120, 0.0
        %v1191 = vmax.f32 %v1125, 0.0
        %v1192 = vmax.f32 %v1128, 0.0
        %v1193 = vmax.f32 %v1133, 0.0
        %v1194 = vmax.f32 %v1136, 0.0
        %v1195 = vmax.f32 %v1141, 0.0
        %v1196 = vmax.f32 %v1144, 0.0
        %v1197 = vmax.f32 %v1149, 0.0
        %v1198 = vmax.f32 %v1152, 0.0
        %v1199 = vmax.f32 %v1157, 0.0
        %v1200 = vmax.f32 %v1160, 0.0
        %v1201 = vmax.f32 %v1165, 0.0
        %v1202 = vmax.f32 %v1168, 0.0
        %v1203 = vpack.c.bf16 %v1172, %v1171
        %v1204 = vpack.c.bf16 %v1174, %v1173
        %v1205 = vpack.c.bf16 %v1176, %v1175
        %v1206 = vpack.c.bf16 %v1178, %v1177
        %v1207 = vpack.c.bf16 %v1180, %v1179
        %v1208 = vpack.c.bf16 %v1182, %v1181
        %v1209 = vpack.c.bf16 %v1184, %v1183
        %v1210 = vpack.c.bf16 %v1186, %v1185
        %v1211 = vpack.c.bf16 %v1188, %v1187
        %v1212 = vpack.c.bf16 %v1190, %v1189
        %v1213 = vpack.c.bf16 %v1192, %v1191
        %v1214 = vpack.c.bf16 %v1194, %v1193
        %v1215 = vpack.c.bf16 %v1196, %v1195
        %v1216 = vpack.c.bf16 %v1198, %v1197
        %v1217 = vpack.c.bf16 %v1200, %v1199
        %v1218 = vpack.c.bf16 %v1202, %v1201
        %v1235 = vunpack.c.l.b16 %v1203
        %v1236 = vunpack.c.h.b16 %v1203
        %v1237 = vunpack.c.l.b16 %v1204
        %v1238 = vunpack.c.h.b16 %v1204
        %v1239 = vunpack.c.l.b16 %v1205
        %v1240 = vunpack.c.h.b16 %v1205
        %v1241 = vunpack.c.l.b16 %v1206
        %v1242 = vunpack.c.h.b16 %v1206
        %v1243 = vunpack.c.l.b16 %v1207
        %v1244 = vunpack.c.h.b16 %v1207
        %v1245 = vunpack.c.l.b16 %v1208
        %v1246 = vunpack.c.h.b16 %v1208
        %v1247 = vunpack.c.l.b16 %v1209
        %v1248 = vunpack.c.h.b16 %v1209
        %v1249 = vunpack.c.l.b16 %v1210
        %v1250 = vunpack.c.h.b16 %v1210
        %v1251 = vunpack.c.l.b16 %v1211
        %v1252 = vunpack.c.h.b16 %v1211
        %v1253 = vunpack.c.l.b16 %v1212
        %v1254 = vunpack.c.h.b16 %v1212
        %v1255 = vunpack.c.l.b16 %v1213
        %v1256 = vunpack.c.h.b16 %v1213
        %v1257 = vunpack.c.l.b16 %v1214
        %v1258 = vunpack.c.h.b16 %v1214
        %v1259 = vunpack.c.l.b16 %v1215
        %v1260 = vunpack.c.h.b16 %v1215
        %v1261 = vunpack.c.l.b16 %v1216
        %v1262 = vunpack.c.h.b16 %v1216
        %v1263 = vunpack.c.l.b16 %v1217
        %v1264 = vunpack.c.h.b16 %v1217
        %v1265 = vunpack.c.l.b16 %v1218
        %v1266 = vunpack.c.h.b16 %v1218
        %v1267 = vpack.c.b16 %v1235, %v1235
        %v1268 = vpack.c.b16 %v1236, %v1236
        %v1269 = vpack.c.b16 %v1237, %v1237
        %v1270 = vpack.c.b16 %v1238, %v1238
        %v1271 = vpack.c.b16 %v1239, %v1239
        %v1272 = vpack.c.b16 %v1240, %v1240
        %v1273 = vpack.c.b16 %v1241, %v1241
        %v1274 = vpack.c.b16 %v1242, %v1242
        %v1275 = vpack.c.b16 %v1243, %v1243
        %v1276 = vpack.c.b16 %v1244, %v1244
        %v1277 = vpack.c.b16 %v1245, %v1245
        %v1278 = vpack.c.b16 %v1246, %v1246
        %v1279 = vpack.c.b16 %v1247, %v1247
        %v1280 = vpack.c.b16 %v1248, %v1248
        %v1281 = vpack.c.b16 %v1249, %v1249
        %v1282 = vpack.c.b16 %v1250, %v1250
        %v1283 = vpack.c.b16 %v1251, %v1251
        %v1284 = vpack.c.b16 %v1252, %v1252
        %v1285 = vpack.c.b16 %v1253, %v1253
        %v1286 = vpack.c.b16 %v1254, %v1254
        %v1287 = vpack.c.b16 %v1255, %v1255
        %v1288 = vpack.c.b16 %v1256, %v1256
        %v1289 = vpack.c.b16 %v1257, %v1257
        %v1290 = vpack.c.b16 %v1258, %v1258
        %v1291 = vpack.c.b16 %v1259, %v1259
        %v1292 = vpack.c.b16 %v1260, %v1260
        %v1293 = vpack.c.b16 %v1261, %v1261
        %v1294 = vpack.c.b16 %v1262, %v1262
        %v1295 = vpack.c.b16 %v1263, %v1263
        %v1296 = vpack.c.b16 %v1264, %v1264
        %v1297 = vpack.c.b16 %v1265, %v1265
        %v1298 = vpack.c.b16 %v1266, %v1266
        %1331 = vst [vmem:[%s214] sm:$0xf] %v1267
        %1332 = vst [vmem:[%s214 + $0x4] sm:$0xf] %v1268
        %1333 = vst [vmem:[%s214 + $0x8] sm:$0xf] %v1269
        %1334 = vst [vmem:[%s214 + $0xc] sm:$0xf] %v1270
        %1335 = vst [vmem:[%s214 + $0x10] sm:$0xf] %v1271
        %1336 = vst [vmem:[%s214 + $0x14] sm:$0xf] %v1272
        %1337 = vst [vmem:[%s214 + $0x18] sm:$0xf] %v1273
        %1338 = vst [vmem:[%s214 + $0x1c] sm:$0xf] %v1274
        %1339 = vst [vmem:[%s214 + $0x20] sm:$0xf] %v1275
        %1340 = vst [vmem:[%s214 + $0x24] sm:$0xf] %v1276
        %1341 = vst [vmem:[%s214 + $0x28] sm:$0xf] %v1277
        %1342 = vst [vmem:[%s214 + $0x2c] sm:$0xf] %v1278
        %1343 = vst [vmem:[%s214 + $0x30] sm:$0xf] %v1279
        %1344 = vst [vmem:[%s214 + $0x34] sm:$0xf] %v1280
        %1345 = vst [vmem:[%s214 + $0x38] sm:$0xf] %v1281
        %1346 = vst [vmem:[%s214 + $0x3c] sm:$0xf] %v1282
        %1347 = vst [vmem:[%s214 + $0x40] sm:$0xf] %v1283
        %1348 = vst [vmem:[%s214 + $0x44] sm:$0xf] %v1284
        %1349 = vst [vmem:[%s214 + $0x48] sm:$0xf] %v1285
        %1350 = vst [vmem:[%s214 + $0x4c] sm:$0xf] %v1286
        %1351 = vst [vmem:[%s214 + $0x50] sm:$0xf] %v1287
        %1352 = vst [vmem:[%s214 + $0x54] sm:$0xf] %v1288
        %1353 = vst [vmem:[%s214 + $0x58] sm:$0xf] %v1289
        %1354 = vst [vmem:[%s214 + $0x5c] sm:$0xf] %v1290
        %1355 = vst [vmem:[%s214 + $0x60] sm:$0xf] %v1291
        %1356 = vst [vmem:[%s214 + $0x64] sm:$0xf] %v1292
        %1357 = vst [vmem:[%s214 + $0x68] sm:$0xf] %v1293
        %1358 = vst [vmem:[%s214 + $0x6c] sm:$0xf] %v1294
        %1359 = vst [vmem:[%s214 + $0x70] sm:$0xf] %v1295
        %1360 = vst [vmem:[%s214 + $0x74] sm:$0xf] %v1296
        %1361 = vst [vmem:[%s214 + $0x78] sm:$0xf] %v1297
        %1362 = vst [vmem:[%s214 + $0x7c] sm:$0xf] %v1298
        %s1363 = sadd.s32 %s26, %s27
        %s1364 = smul.u32 %s1363, 256
        %v1365 = vlaneseq
        %v1366 = vshrl.u32 %v1365, 7
        %v1367 = vadd.s32 %v1366, 8
        %v1368 = vadd.s32 %v1366, 16
        %v1369 = vadd.s32 %v1366, 24
        %v1370 = vadd.s32 %v1366, 32
        %v1371 = vadd.s32 %v1366, 40
        %v1372 = vadd.s32 %v1366, 48
        %v1373 = vadd.s32 %v1366, 56
        %v1374 = vadd.s32 %v1366, 64
        %v1375 = vadd.s32 %v1366, 72
        %v1376 = vadd.s32 %v1366, 80
        %v1377 = vadd.s32 %v1366, 88
        %v1378 = vadd.s32 %v1366, 96
        %v1379 = vadd.s32 %v1366, 104
        %v1380 = vadd.s32 %v1366, 112
        %v1381 = vadd.s32 %v1366, 120
        %v1382 = vadd.s32 %v1366, 128
        %v1383 = vadd.s32 %v1366, 136
        %v1384 = vadd.s32 %v1366, 144
        %v1385 = vadd.s32 %v1366, 152
        %v1386 = vadd.s32 %v1366, 160
        %v1387 = vadd.s32 %v1366, 168
        %v1388 = vadd.s32 %v1366, 176
        %v1389 = vadd.s32 %v1366, 184
        %v1390 = vadd.s32 %v1366, 192
        %v1391 = vadd.s32 %v1366, 200
        %v1392 = vadd.s32 %v1366, 208
        %v1393 = vadd.s32 %v1366, 216
        %v1394 = vadd.s32 %v1366, 224
        %v1395 = vadd.s32 %v1366, 232
        %v1396 = vadd.s32 %v1366, 240
        %v1397 = vadd.s32 %v1366, 248
        %v1398 = vstv %s1364
        %v1399 = vadd.s32 %v1398, %v1366
        %v1400 = vadd.s32 %v1398, %v1367
        %v1401 = vadd.s32 %v1398, %v1368
        %v1402 = vadd.s32 %v1398, %v1369
        %v1403 = vadd.s32 %v1398, %v1370
        %v1404 = vadd.s32 %v1398, %v1371
        %v1405 = vadd.s32 %v1398, %v1372
        %v1406 = vadd.s32 %v1398, %v1373
        %v1407 = vadd.s32 %v1398, %v1374
        %v1408 = vadd.s32 %v1398, %v1375
        %v1409 = vadd.s32 %v1398, %v1376
        %v1410 = vadd.s32 %v1398, %v1377
        %v1411 = vadd.s32 %v1398, %v1378
        %v1412 = vadd.s32 %v1398, %v1379
        %v1413 = vadd.s32 %v1398, %v1380
        %v1414 = vadd.s32 %v1398, %v1381
        %v1415 = vadd.s32 %v1398, %v1382
        %v1416 = vadd.s32 %v1398, %v1383
        %v1417 = vadd.s32 %v1398, %v1384
        %v1418 = vadd.s32 %v1398, %v1385
        %v1419 = vadd.s32 %v1398, %v1386
        %v1420 = vadd.s32 %v1398, %v1387
        %v1421 = vadd.s32 %v1398, %v1388
        %v1422 = vadd.s32 %v1398, %v1389
        %v1423 = vadd.s32 %v1398, %v1390
        %v1424 = vadd.s32 %v1398, %v1391
        %v1425 = vadd.s32 %v1398, %v1392
        %v1426 = vadd.s32 %v1398, %v1393
        %v1427 = vadd.s32 %v1398, %v1394
        %v1428 = vadd.s32 %v1398, %v1395
        %v1429 = vadd.s32 %v1398, %v1396
        %v1430 = vadd.s32 %v1398, %v1397
        %vm1431 = vcmp.lt.s32.totalorder %v1399, 16
        %vm1432 = vcmp.lt.s32.totalorder %v1400, 16
        %vm1433 = vcmp.lt.s32.totalorder %v1401, 16
        %vm1434 = vcmp.lt.s32.totalorder %v1402, 16
        %vm1435 = vcmp.lt.s32.totalorder %v1403, 16
        %vm1436 = vcmp.lt.s32.totalorder %v1404, 16
        %vm1437 = vcmp.lt.s32.totalorder %v1405, 16
        %vm1438 = vcmp.lt.s32.totalorder %v1406, 16
        %vm1439 = vcmp.lt.s32.totalorder %v1407, 16
        %vm1440 = vcmp.lt.s32.totalorder %v1408, 16
        %vm1441 = vcmp.lt.s32.totalorder %v1409, 16
        %vm1442 = vcmp.lt.s32.totalorder %v1410, 16
        %vm1443 = vcmp.lt.s32.totalorder %v1411, 16
        %vm1444 = vcmp.lt.s32.totalorder %v1412, 16
        %vm1445 = vcmp.lt.s32.totalorder %v1413, 16
        %vm1446 = vcmp.lt.s32.totalorder %v1414, 16
        %vm1447 = vcmp.lt.s32.totalorder %v1415, 16
        %vm1448 = vcmp.lt.s32.totalorder %v1416, 16
        %vm1449 = vcmp.lt.s32.totalorder %v1417, 16
        %vm1450 = vcmp.lt.s32.totalorder %v1418, 16
        %vm1451 = vcmp.lt.s32.totalorder %v1419, 16
        %vm1452 = vcmp.lt.s32.totalorder %v1420, 16
        %vm1453 = vcmp.lt.s32.totalorder %v1421, 16
        %vm1454 = vcmp.lt.s32.totalorder %v1422, 16
        %vm1455 = vcmp.lt.s32.totalorder %v1423, 16
        %vm1456 = vcmp.lt.s32.totalorder %v1424, 16
        %vm1457 = vcmp.lt.s32.totalorder %v1425, 16
        %vm1458 = vcmp.lt.s32.totalorder %v1426, 16
        %vm1459 = vcmp.lt.s32.totalorder %v1427, 16
        %vm1460 = vcmp.lt.s32.totalorder %v1428, 16
        %vm1461 = vcmp.lt.s32.totalorder %v1429, 16
        %vm1462 = vcmp.lt.s32.totalorder %v1430, 16
        %v1463 = vsel %vm1431, 1, 0
        %v1464 = vsel %vm1432, 1, 0
        %v1465 = vsel %vm1433, 1, 0
        %v1466 = vsel %vm1434, 1, 0
        %v1467 = vsel %vm1435, 1, 0
        %v1468 = vsel %vm1436, 1, 0
        %v1469 = vsel %vm1437, 1, 0
        %v1470 = vsel %vm1438, 1, 0
        %v1471 = vsel %vm1439, 1, 0
        %v1472 = vsel %vm1440, 1, 0
        %v1473 = vsel %vm1441, 1, 0
        %v1474 = vsel %vm1442, 1, 0
        %v1475 = vsel %vm1443, 1, 0
        %v1476 = vsel %vm1444, 1, 0
        %v1477 = vsel %vm1445, 1, 0
        %v1478 = vsel %vm1446, 1, 0
        %v1479 = vsel %vm1447, 1, 0
        %v1480 = vsel %vm1448, 1, 0
        %v1481 = vsel %vm1449, 1, 0
        %v1482 = vsel %vm1450, 1, 0
        %v1483 = vsel %vm1451, 1, 0
        %v1484 = vsel %vm1452, 1, 0
        %v1485 = vsel %vm1453, 1, 0
        %v1486 = vsel %vm1454, 1, 0
        %v1487 = vsel %vm1455, 1, 0
        %v1488 = vsel %vm1456, 1, 0
        %v1489 = vsel %vm1457, 1, 0
        %v1490 = vsel %vm1458, 1, 0
        %v1491 = vsel %vm1459, 1, 0
        %v1492 = vsel %vm1460, 1, 0
        %v1493 = vsel %vm1461, 1, 0
        %v1494 = vsel %vm1462, 1, 0
        %vm1495 = vcmp.eq.s32.totalorder %v1463, 1
        %vm1496 = vcmp.eq.s32.totalorder %v1464, 1
        %vm1497 = vcmp.eq.s32.totalorder %v1465, 1
        %vm1498 = vcmp.eq.s32.totalorder %v1466, 1
        %vm1499 = vcmp.eq.s32.totalorder %v1467, 1
        %vm1500 = vcmp.eq.s32.totalorder %v1468, 1
        %vm1501 = vcmp.eq.s32.totalorder %v1469, 1
        %vm1502 = vcmp.eq.s32.totalorder %v1470, 1
        %vm1503 = vcmp.eq.s32.totalorder %v1471, 1
        %vm1504 = vcmp.eq.s32.totalorder %v1472, 1
        %vm1505 = vcmp.eq.s32.totalorder %v1473, 1
        %vm1506 = vcmp.eq.s32.totalorder %v1474, 1
        %vm1507 = vcmp.eq.s32.totalorder %v1475, 1
        %vm1508 = vcmp.eq.s32.totalorder %v1476, 1
        %vm1509 = vcmp.eq.s32.totalorder %v1477, 1
        %vm1510 = vcmp.eq.s32.totalorder %v1478, 1
        %vm1511 = vcmp.eq.s32.totalorder %v1479, 1
        %vm1512 = vcmp.eq.s32.totalorder %v1480, 1
        %vm1513 = vcmp.eq.s32.totalorder %v1481, 1
        %vm1514 = vcmp.eq.s32.totalorder %v1482, 1
        %vm1515 = vcmp.eq.s32.totalorder %v1483, 1
        %vm1516 = vcmp.eq.s32.totalorder %v1484, 1
        %vm1517 = vcmp.eq.s32.totalorder %v1485, 1
        %vm1518 = vcmp.eq.s32.totalorder %v1486, 1
        %vm1519 = vcmp.eq.s32.totalorder %v1487, 1
        %vm1520 = vcmp.eq.s32.totalorder %v1488, 1
        %vm1521 = vcmp.eq.s32.totalorder %v1489, 1
        %vm1522 = vcmp.eq.s32.totalorder %v1490, 1
        %vm1523 = vcmp.eq.s32.totalorder %v1491, 1
        %vm1524 = vcmp.eq.s32.totalorder %v1492, 1
        %vm1525 = vcmp.eq.s32.totalorder %v1493, 1
        %vm1526 = vcmp.eq.s32.totalorder %v1494, 1
        %v1527 = vsel %vm1495, %v1171, 0.0
        %v1528 = vsel %vm1496, %v1172, 0.0
        %v1529 = vsel %vm1497, %v1173, 0.0
        %v1530 = vsel %vm1498, %v1174, 0.0
        %v1531 = vsel %vm1499, %v1175, 0.0
        %v1532 = vsel %vm1500, %v1176, 0.0
        %v1533 = vsel %vm1501, %v1177, 0.0
        %v1534 = vsel %vm1502, %v1178, 0.0
        %v1535 = vsel %vm1503, %v1179, 0.0
        %v1536 = vsel %vm1504, %v1180, 0.0
        %v1537 = vsel %vm1505, %v1181, 0.0
        %v1538 = vsel %vm1506, %v1182, 0.0
        %v1539 = vsel %vm1507, %v1183, 0.0
        %v1540 = vsel %vm1508, %v1184, 0.0
        %v1541 = vsel %vm1509, %v1185, 0.0
        %v1542 = vsel %vm1510, %v1186, 0.0
        %v1543 = vsel %vm1511, %v1187, 0.0
        %v1544 = vsel %vm1512, %v1188, 0.0
        %v1545 = vsel %vm1513, %v1189, 0.0
        %v1546 = vsel %vm1514, %v1190, 0.0
        %v1547 = vsel %vm1515, %v1191, 0.0
        %v1548 = vsel %vm1516, %v1192, 0.0
        %v1549 = vsel %vm1517, %v1193, 0.0
        %v1550 = vsel %vm1518, %v1194, 0.0
        %v1551 = vsel %vm1519, %v1195, 0.0
        %v1552 = vsel %vm1520, %v1196, 0.0
        %v1553 = vsel %vm1521, %v1197, 0.0
        %v1554 = vsel %vm1522, %v1198, 0.0
        %v1555 = vsel %vm1523, %v1199, 0.0
        %v1556 = vsel %vm1524, %v1200, 0.0
        %v1557 = vsel %vm1525, %v1201, 0.0
        %v1558 = vsel %vm1526, %v1202, 0.0
        %v1559 = vadd.f32 %v1527, %v1528
        %v1560 = vadd.f32 %v1559, %v1529
        %v1561 = vadd.f32 %v1560, %v1530
        %v1562 = vadd.f32 %v1561, %v1531
        %v1563 = vadd.f32 %v1562, %v1532
        %v1564 = vadd.f32 %v1563, %v1533
        %v1565 = vadd.f32 %v1564, %v1534
        %v1566 = vadd.f32 %v1565, %v1535
        %v1567 = vadd.f32 %v1566, %v1536
        %v1568 = vadd.f32 %v1567, %v1537
        %v1569 = vadd.f32 %v1568, %v1538
        %v1570 = vadd.f32 %v1569, %v1539
        %v1571 = vadd.f32 %v1570, %v1540
        %v1572 = vadd.f32 %v1571, %v1541
        %v1573 = vadd.f32 %v1572, %v1542
        %v1574 = vadd.f32 %v1573, %v1543
        %v1575 = vadd.f32 %v1574, %v1544
        %v1576 = vadd.f32 %v1575, %v1545
        %v1577 = vadd.f32 %v1576, %v1546
        %v1578 = vadd.f32 %v1577, %v1547
        %v1579 = vadd.f32 %v1578, %v1548
        %v1580 = vadd.f32 %v1579, %v1549
        %v1581 = vadd.f32 %v1580, %v1550
        %v1582 = vadd.f32 %v1581, %v1551
        %v1583 = vadd.f32 %v1582, %v1552
        %v1584 = vadd.f32 %v1583, %v1553
        %v1585 = vadd.f32 %v1584, %v1554
        %v1586 = vadd.f32 %v1585, %v1555
        %v1587 = vadd.f32 %v1586, %v1556
        %v1588 = vadd.f32 %v1587, %v1557
        %v1589 = vadd.f32 %v1588, %v1558
        %v1590 = vrot.slane %v1589, 4
        %v1591 = vadd.f32 %v1589, %v1590
        %v1592 = vrot.slane %v1591, 2
        %v1593 = vadd.f32 %v1591, %v1592
        %v1594 = vrot.slane %v1593, 1
        %v1595 = vadd.f32 %v1593, %v1594
        %v1596 = vmul.f32 %v1527, %v1527
        %v1597 = vmul.f32 %v1528, %v1528
        %v1598 = vmul.f32 %v1529, %v1529
        %v1599 = vmul.f32 %v1530, %v1530
        %v1600 = vmul.f32 %v1531, %v1531
        %v1601 = vmul.f32 %v1532, %v1532
        %v1602 = vmul.f32 %v1533, %v1533
        %v1603 = vmul.f32 %v1534, %v1534
        %v1604 = vmul.f32 %v1535, %v1535
        %v1605 = vmul.f32 %v1536, %v1536
        %v1606 = vmul.f32 %v1537, %v1537
        %v1607 = vmul.f32 %v1538, %v1538
        %v1608 = vmul.f32 %v1539, %v1539
        %v1609 = vmul.f32 %v1540, %v1540
        %v1610 = vmul.f32 %v1541, %v1541
        %v1611 = vmul.f32 %v1542, %v1542
        %v1612 = vmul.f32 %v1543, %v1543
        %v1613 = vmul.f32 %v1544, %v1544
        %v1614 = vmul.f32 %v1545, %v1545
        %v1615 = vmul.f32 %v1546, %v1546
        %v1616 = vmul.f32 %v1547, %v1547
        %v1617 = vmul.f32 %v1548, %v1548
        %v1618 = vmul.f32 %v1549, %v1549
        %v1619 = vmul.f32 %v1550, %v1550
        %v1620 = vmul.f32 %v1551, %v1551
        %v1621 = vmul.f32 %v1552, %v1552
        %v1622 = vmul.f32 %v1553, %v1553
        %v1623 = vmul.f32 %v1554, %v1554
        %v1624 = vmul.f32 %v1555, %v1555
        %v1625 = vmul.f32 %v1556, %v1556
        %v1626 = vmul.f32 %v1557, %v1557
        %v1627 = vmul.f32 %v1558, %v1558
        %v1628 = vadd.f32 %v1596, %v1597
        %v1629 = vadd.f32 %v1628, %v1598
        %v1630 = vadd.f32 %v1629, %v1599
        %v1631 = vadd.f32 %v1630, %v1600
        %v1632 = vadd.f32 %v1631, %v1601
        %v1633 = vadd.f32 %v1632, %v1602
        %v1634 = vadd.f32 %v1633, %v1603
        %v1635 = vadd.f32 %v1634, %v1604
        %v1636 = vadd.f32 %v1635, %v1605
        %v1637 = vadd.f32 %v1636, %v1606
        %v1638 = vadd.f32 %v1637, %v1607
        %v1639 = vadd.f32 %v1638, %v1608
        %v1640 = vadd.f32 %v1639, %v1609
        %v1641 = vadd.f32 %v1640, %v1610
        %v1642 = vadd.f32 %v1641, %v1611
        %v1643 = vadd.f32 %v1642, %v1612
        %v1644 = vadd.f32 %v1643, %v1613
        %v1645 = vadd.f32 %v1644, %v1614
        %v1646 = vadd.f32 %v1645, %v1615
        %v1647 = vadd.f32 %v1646, %v1616
        %v1648 = vadd.f32 %v1647, %v1617
        %v1649 = vadd.f32 %v1648, %v1618
        %v1650 = vadd.f32 %v1649, %v1619
        %v1651 = vadd.f32 %v1650, %v1620
        %v1652 = vadd.f32 %v1651, %v1621
        %v1653 = vadd.f32 %v1652, %v1622
        %v1654 = vadd.f32 %v1653, %v1623
        %v1655 = vadd.f32 %v1654, %v1624
        %v1656 = vadd.f32 %v1655, %v1625
        %v1657 = vadd.f32 %v1656, %v1626
        %v1658 = vadd.f32 %v1657, %v1627
        %v1659 = vrot.slane %v1658, 4
        %v1660 = vadd.f32 %v1658, %v1659
        %v1661 = vrot.slane %v1660, 2
        %v1662 = vadd.f32 %v1660, %v1661
        %v1663 = vrot.slane %v1662, 1
        %v1664 = vadd.f32 %v1662, %v1663
        %vm1665 = vcmask 1040384
        %v1666 = vsel %vm1665, %v1595, %v1664
        %p1667 = scmp.eq.s32.totalorder %s27, 0
        // Predicated region
        $region33: #{tpu_custom_call.1} parent=31 // pred_check
          %p1668 = pneg %p1667
        $region34: #{tpu_custom_call.1} parent=31 // pred_check_branch
          %1670 = sbr.rel (%p1668) target = $region36
        $region35: #{tpu_custom_call.1} parent=31 // pred_region
          %1671 = vst [vmem:[%s221] sm:$0x3] 0.0
        $region36: #{tpu_custom_call.1} parent=31 // pred_fallthru
          _
        %v1672 = vld [vmem:[%s221] sm:$0x3]
        %v1673 = vadd.f32 %v1672, %v1666
        %1674 = vst [vmem:[%s221] sm:$0x3] %v1673
        %s1675 = sand.u32 %s114, 1
        %s1676 = scalar_lea.sflag [#allocation3], %s1675
        %s1677 = sand.u32 %s114, 1
        %s1678 = smul.addr %s1677, 128
        %s1679 = scalar_lea.vmem [#allocation2], %s1678
        %s1680 = sand.u32 %s140, 1
        %s1681 = scalar_lea.sflag [#allocation5], %s1680
        %s1682 = sand.u32 %s140, 1
        %s1683 = smul.addr %s1682, 2
        %s1684 = scalar_lea.vmem [#allocation4], %s1683
        // Predicated region
        $region37: #{tpu_custom_call.1} parent=31 // pred_check
          %p1685 = pneg %p124
        $region38: #{tpu_custom_call.1} parent=31 // pred_check_branch
          %1687 = sbr.rel (%p1685) target = $region40
        $region39: #{tpu_custom_call.1} parent=31 // pred_region
          %s1688 = sadd.s32 %s26, %s27
          %s1689 = smul.u32 32, %s1688
          %s1691 = ssub.s32 2048, 2048
          %1692 = vsyncadd %s1676, %s1691
          %s1693 = smul.addr %s1689, 64
          %s1694 = scalar_lea.hbm %s3, %s1693
          %s1695 = sshll.u32 %s1679, 4
          %s1696 = int_to_ptr.vmem [resolvable:$true] %s1695
          %1701 = dma.vmem_to_hbm [thread:$0]  %s1696, 2048, %s1694, %s1676, 64, 64, 4
        $region40: #{tpu_custom_call.1} parent=31 // pred_fallthru
          _
        // Predicated region
        $region41: #{tpu_custom_call.1} parent=31 // pred_check
          %p1702 = pneg %p150
        $region42: #{tpu_custom_call.1} parent=31 // pred_check_branch
          %1704 = sbr.rel (%p1702) target = $region44
        $region43: #{tpu_custom_call.1} parent=31 // pred_region
          %s1706 = ssub.s32 32, 32
          %1707 = vsyncadd %s1681, %s1706
          %s1708 = smul.addr %s26, 32
          %s1709 = scalar_lea.hbm %s4, %s1708
          %s1711 = sshll.u32 %s1684, 4
          %s1712 = int_to_ptr.vmem [resolvable:$true] %s1711
          %1714 = dma.vmem_to_hbm [thread:$0]  %s1712, 32, %s1709, %s1681
        $region44: #{tpu_custom_call.1} parent=31 // pred_fallthru
          _
      $region32: #{tpu_custom_call.1} parent=5 // pred_fallthru
        _
      %p1715 = scmp.le.s32.totalorder 2, %s17
      // Predicated region
      $region45: #{tpu_custom_call.1} parent=5 // pred_check
        %p1716 = pneg %p1715
      $region46: #{tpu_custom_call.1} parent=5 // pred_check_branch
        %1718 = sbr.rel (%p1716) target = $region48
      $region47: #{tpu_custom_call.1} parent=5 // pred_region
        %s1719 = ssub.s32 %s17, 2
        // Predicated region
        $region49: #{tpu_custom_call.1} parent=47 // pred_check
          %p1720 = pneg %p130
        $region50: #{tpu_custom_call.1} parent=47 // pred_check_branch
          %1722 = sbr.rel (%p1720) target = $region52
        $region51: #{tpu_custom_call.1} parent=47 // pred_region
          %s1723 = sand.u32 %s115, 1
          %s1724 = scalar_lea.sflag [#allocation3], %s1723
          %s1725 = sand.u32 %s115, 1
          %s1726 = smul.addr %s1725, 128
          %s1727 = scalar_lea.vmem [#allocation2], %s1726
          %1728 = dma.done %s1724, 2048
        $region52: #{tpu_custom_call.1} parent=47 // pred_fallthru
          _
        // Predicated region
        $region53: #{tpu_custom_call.1} parent=47 // pred_check
          %p1729 = pneg %p156
        $region54: #{tpu_custom_call.1} parent=47 // pred_check_branch
          %1731 = sbr.rel (%p1729) target = $region56
        $region55: #{tpu_custom_call.1} parent=47 // pred_region
          %s1732 = sand.u32 %s141, 1
          %s1733 = scalar_lea.sflag [#allocation5], %s1732
          %s1734 = sand.u32 %s141, 1
          %s1735 = smul.addr %s1734, 2
          %s1736 = scalar_lea.vmem [#allocation4], %s1735
          %1737 = dma.done %s1733, 32
        $region56: #{tpu_custom_call.1} parent=47 // pred_fallthru
          _
      $region48: #{tpu_custom_call.1} parent=5 // pred_fallthru
        _
    $region6: #{tpu_custom_call.1} parent=1 // loop_footer
      %s21 = sadd.s32 1, %s17
    $region7: #{tpu_custom_call.1} parent=1 // loop_footer_branch
      %16 = sbr.rel target = $region3
    $region8: #{tpu_custom_call.1} parent=1 // loop_exit
      _
    %1738 = vsyncpa [#allocation3], 1
    %s1739 = scalar_lea.sflag [#allocation3], 1
    %1740 = vsyncpa %s1739, 1
    %1741 = vsyncpa [#allocation5], 1
    %s1742 = scalar_lea.sflag [#allocation5], 1
    %1743 = vsyncpa %s1742, 1

</llo_original>
